<compile_context>
chip_gen: v5e
topology: v5e:2x2
jax: 0.10.0
libtpu: 0.0.40
codegen_flags: <defaults>
</compile_context>

<pallas_src>
import jax
import jax.numpy as jnp
from jax.experimental import pallas as pl
from jax.experimental.pallas import tpu as pltpu

IN_DIM = 784
HID_DIM = 400
OUT_DIM = 10
OUT_PAD = 128          # lane-dense output width (first OUT_DIM lanes valid)
MAX_TILE_B = 1024      # sized for v7x 64 MiB VMEM; plenty of headroom on v5e/v6e


def vae_fwd_kernel(x_ref, w1t_ref, b1_ref, w2t_ref, b2_ref, out_ref):
    # x_ref:   [TILE_B, 784] bf16
    # w1t_ref: [784, 400] bf16     b1_ref: [1, 400] f32
    # w2t_ref: [400, 128] bf16     b2_ref: [1, 128] f32
    # out_ref: [TILE_B, 128] f32
    h = jnp.dot(x_ref[...], w1t_ref[...],
                preferred_element_type=jnp.float32) + b1_ref[...]
    h = jnp.maximum(h, 0.0)                                    # ReLU (f32)
    out_ref[...] = jnp.dot(h.astype(jnp.bfloat16), w2t_ref[...],
                           preferred_element_type=jnp.float32) + b2_ref[...]


def prepare_params(w1, b1, w2, b2):
    """One-time conversion of PyTorch-layout params into kernel layout.

    w1: [400, 784], b1: [400], w2: [10, 400], b2: [10]  (nn.Linear layout)
    Returns pre-transposed / bf16-cast / lane-padded arrays.  Do NOT re-run
    this per forward call.
    """
    w1t = jnp.transpose(w1).astype(jnp.bfloat16)                      # [784, 400]
    b1r = b1.reshape(1, HID_DIM).astype(jnp.float32)                  # [1, 400]
    w2t = jnp.zeros((HID_DIM, OUT_PAD), jnp.bfloat16)
    w2t = w2t.at[:, :OUT_DIM].set(jnp.transpose(w2).astype(jnp.bfloat16))
    b2r = jnp.zeros((1, OUT_PAD), jnp.float32)
    b2r = b2r.at[:, :OUT_DIM].set(b2.astype(jnp.float32))
    return w1t, b1r, w2t, b2r


def _round_up(x, m):
    return (x + m - 1) // m * m


@jax.jit
def vae_forward(x, w1t, b1r, w2t, b2r):
    """Forward: fc2(relu(fc1(x.view(-1, 784)))).  Returns [B, 10] float32."""
    x2d = x.reshape(-1, IN_DIM)                      # x.view(-1, 784)
    B = x2d.shape[0]

    tile_b = min(MAX_TILE_B, _round_up(B, 8))
    B_pad = _round_up(B, tile_b)
    if B_pad != B:
        x2d = jnp.pad(x2d, ((0, B_pad - B), (0, 0)))
    x2d = x2d.astype(jnp.bfloat16)                   # halve x DMA bytes

    grid = (B_pad // tile_b,)
    cost = pl.CostEstimate(
        flops=2 * B_pad * (IN_DIM * HID_DIM + HID_DIM * OUT_PAD),
        transcendentals=0,
        bytes_accessed=(B_pad * IN_DIM * 2                      # x (bf16)
                        + IN_DIM * HID_DIM * 2                  # w1t (bf16)
                        + HID_DIM * OUT_PAD * 2                 # w2t (bf16)
                        + (HID_DIM + OUT_PAD) * 4               # biases (f32)
                        + B_pad * OUT_PAD * 4),                 # out (f32)
    )

    out = pl.pallas_call(
        vae_fwd_kernel,
        out_shape=jax.ShapeDtypeStruct((B_pad, OUT_PAD), jnp.float32),
        grid=grid,
        in_specs=[
            pl.BlockSpec((tile_b, IN_DIM), lambda i: (i, 0)),    # x: batch-tiled
            pl.BlockSpec((IN_DIM, HID_DIM), lambda i: (0, 0)),   # w1t: resident
            pl.BlockSpec((1, HID_DIM), lambda i: (0, 0)),        # b1:  resident
            pl.BlockSpec((HID_DIM, OUT_PAD), lambda i: (0, 0)),  # w2t: resident
            pl.BlockSpec((1, OUT_PAD), lambda i: (0, 0)),        # b2:  resident
        ],
        out_specs=pl.BlockSpec((tile_b, OUT_PAD), lambda i: (i, 0)),
        compiler_params=pltpu.CompilerParams(
            dimension_semantics=("parallel",)),                  # megacore on v7x
        cost_estimate=cost,
    )(x2d, w1t, b1r, w2t, b2r)

    return out[:B, :OUT_DIM]                         # drop batch pad + lane pad


def init_params(key):
    """Deterministic init mimicking nn.Linear's uniform(-1/sqrt(fan_in), +...)."""
    k1, k2, k3, k4 = jax.random.split(key, 4)
    bound1 = 1.0 / jnp.sqrt(IN_DIM)
    bound2 = 1.0 / jnp.sqrt(HID_DIM)
    w1 = jax.random.uniform(k1, (HID_DIM, IN_DIM), jnp.float32, -bound1, bound1)
    b1 = jax.random.uniform(k2, (HID_DIM,), jnp.float32, -bound1, bound1)
    w2 = jax.random.uniform(k3, (OUT_DIM, HID_DIM), jnp.float32, -bound2, bound2)
    b2 = jax.random.uniform(k4, (OUT_DIM,), jnp.float32, -bound2, bound2)
    # self.lr parameter (set to 0.1 in __init__); unused in the forward pass.
    lr = jnp.array([0.1], jnp.float32)
    return w1, b1, w2, b2, lr


if __name__ == "__main__":
    key = jax.random.PRNGKey(0)
    kx, kp = jax.random.split(key)

    # MNIST-style input: [batch, 1, 28, 28] -> view(-1, 784) inside the wrapper.
    B = 8
    x = jax.random.normal(kx, (B, 1, 28, 28), jnp.float32)

    w1, b1, w2, b2, _lr = init_params(kp)
    # Prepare weights once (transpose / bf16 cast / lane pad) -- not per call.
    w1t, b1r, w2t, b2r = prepare_params(w1, b1, w2, b2)

    out = vae_forward(x, w1t, b1r, w2t, b2r)
    out = jax.block_until_ready(out)

    # Reference check in plain f32 JAX (same math as the PyTorch module).
    ref = jnp.maximum(x.reshape(-1, IN_DIM) @ w1.T + b1, 0.0) @ w2.T + b2
    assert out.shape == (B, OUT_DIM)
    # bf16 matmul operands -> loosened tolerance vs. the f32 reference.
    assert jnp.allclose(out, ref, atol=5e-2, rtol=5e-2), float(
        jnp.max(jnp.abs(out - ref)))

    print("KERNEL_OK")
</pallas_src>

<mosaic_0001>
module attributes {stable_mosaic.version = 11 : i64} {
  func.func @vae_fwd_kernel(%arg0: i32, %arg1: memref<8x784xbf16, #tpu.memory_space<vmem>>, %arg2: memref<784x400xbf16, #tpu.memory_space<vmem>>, %arg3: memref<1x400xf32, #tpu.memory_space<vmem>>, %arg4: memref<400x128xbf16, #tpu.memory_space<vmem>>, %arg5: memref<1x128xf32, #tpu.memory_space<vmem>>, %arg6: memref<8x128xf32, #tpu.memory_space<vmem>>) attributes {dimension_semantics = [#tpu.dimension_semantics<parallel>], iteration_bounds = array<i64: 1>, scalar_prefetch = 0 : i64, scratch_operands = 0 : i64, tpu.core_type = #tpu.core_type<tc>, window_params = [{transform_indices = @transform_0, window_bounds = array<i64: 8, 784>}, {pipeline_mode = #tpu.pipeline_mode<synchronous>, transform_indices = @transform_1, window_bounds = array<i64: 784, 400>}, {pipeline_mode = #tpu.pipeline_mode<synchronous>, transform_indices = @transform_2, window_bounds = array<i64: 1, 400>}, {pipeline_mode = #tpu.pipeline_mode<synchronous>, transform_indices = @transform_3, window_bounds = array<i64: 400, 128>}, {pipeline_mode = #tpu.pipeline_mode<synchronous>, transform_indices = @transform_4, window_bounds = array<i64: 1, 128>}, {transform_indices = @transform_5, window_bounds = array<i64: 8, 128>}]} {
    %c0 = arith.constant 0 : index
    %c0_0 = arith.constant 0 : index
    %0 = vector.load %arg1[%c0, %c0_0] : memref<8x784xbf16, #tpu.memory_space<vmem>>, vector<8x784xbf16>
    %c0_1 = arith.constant 0 : index
    %c0_2 = arith.constant 0 : index
    %1 = vector.load %arg2[%c0_1, %c0_2] : memref<784x400xbf16, #tpu.memory_space<vmem>>, vector<784x400xbf16>
    %cst = arith.constant dense<0.000000e+00> : vector<8x400xf32>
    %2 = tpu.matmul %0, %1, %cst {dimension_numbers = #tpu.dot_dimension_numbers<[1], [0], [0], [1], [0, 0, 1, 1], [], []>} : vector<8x784xbf16>, vector<784x400xbf16>, vector<8x400xf32> -> vector<8x400xf32>
    %c0_3 = arith.constant 0 : index
    %c0_4 = arith.constant 0 : index
    %3 = vector.load %arg3[%c0_3, %c0_4] : memref<1x400xf32, #tpu.memory_space<vmem>>, vector<1x400xf32>
    %4 = vector.broadcast %3 : vector<1x400xf32> to vector<8x400xf32>
    %5 = arith.addf %2, %4 : vector<8x400xf32>
    %cst_5 = arith.constant 0.000000e+00 : f32
    %6 = vector.broadcast %cst_5 : f32 to vector<8x400xf32>
    %7 = arith.maximumf %5, %6 : vector<8x400xf32>
    %8 = arith.truncf %7 : vector<8x400xf32> to vector<8x400xbf16>
    %c0_6 = arith.constant 0 : index
    %c0_7 = arith.constant 0 : index
    %9 = vector.load %arg4[%c0_6, %c0_7] : memref<400x128xbf16, #tpu.memory_space<vmem>>, vector<400x128xbf16>
    %cst_8 = arith.constant dense<0.000000e+00> : vector<8x128xf32>
    %10 = tpu.matmul %8, %9, %cst_8 {dimension_numbers = #tpu.dot_dimension_numbers<[1], [0], [0], [1], [0, 0, 1, 1], [], []>} : vector<8x400xbf16>, vector<400x128xbf16>, vector<8x128xf32> -> vector<8x128xf32>
    %c0_9 = arith.constant 0 : index
    %c0_10 = arith.constant 0 : index
    %11 = vector.load %arg5[%c0_9, %c0_10] : memref<1x128xf32, #tpu.memory_space<vmem>>, vector<1x128xf32>
    %12 = vector.broadcast %11 : vector<1x128xf32> to vector<8x128xf32>
    %13 = arith.addf %10, %12 : vector<8x128xf32>
    %c0_11 = arith.constant 0 : index
    %c0_12 = arith.constant 0 : index
    %14 = vector.load %arg6[%c0_11, %c0_12] : memref<8x128xf32, #tpu.memory_space<vmem>>, vector<8x128xf32>
    tpu.vector_store %arg6[%c0_11, %c0_12], %13 {strides = array<i32>} : memref<8x128xf32, #tpu.memory_space<vmem>>, vector<8x128xf32>,
    return
  }
  func.func @transform_0(%arg0: i32) -> (i32, i32) {
    %c0_i32 = arith.constant 0 : i32
    %c0_i32_0 = arith.constant 0 : i32
    return %arg0, %c0_i32 : i32, i32
  }
  func.func @transform_1(%arg0: i32) -> (i32, i32) {
    %c0_i32 = arith.constant 0 : i32
    %c0_i32_0 = arith.constant 0 : i32
    %c0_i32_1 = arith.constant 0 : i32
    return %c0_i32, %c0_i32_0 : i32, i32
  }
  func.func @transform_2(%arg0: i32) -> (i32, i32) {
    %c0_i32 = arith.constant 0 : i32
    %c0_i32_0 = arith.constant 0 : i32
    %c0_i32_1 = arith.constant 0 : i32
    return %c0_i32, %c0_i32_0 : i32, i32
  }
  func.func @transform_3(%arg0: i32) -> (i32, i32) {
    %c0_i32 = arith.constant 0 : i32
    %c0_i32_0 = arith.constant 0 : i32
    %c0_i32_1 = arith.constant 0 : i32
    return %c0_i32, %c0_i32_0 : i32, i32
  }
  func.func @transform_4(%arg0: i32) -> (i32, i32) {
    %c0_i32 = arith.constant 0 : i32
    %c0_i32_0 = arith.constant 0 : i32
    %c0_i32_1 = arith.constant 0 : i32
    return %c0_i32, %c0_i32_0 : i32, i32
  }
  func.func @transform_5(%arg0: i32) -> (i32, i32) {
    %c0_i32 = arith.constant 0 : i32
    %c0_i32_0 = arith.constant 0 : i32
    return %arg0, %c0_i32 : i32, i32
  }
}

</mosaic_0001>

<llo_original>
// kernel: vae_forward.1
$region0: #{vae_forward.1}
  #allocation0 [shape = 'u32[]', space=smem, size = 0x4, offset = 0x4, fixed_abs, tag = 'smem constant byte address 0x4 - core index']
  #allocation1 [shape = 'u32[72,128]{1,0:T(1,128)}', space=vmem, size = 0x9000, scoped, tag = 'internal scratch']
  %s0 = inlined_call_operand.vmem [shape: bf16[8,784], index: 0, kind: input, shape index: {}]
  %s1 = inlined_call_operand.vmem [shape: bf16[784,400], index: 1, kind: input, shape index: {}]
  %s2 = inlined_call_operand.vmem [shape: f32[1,400], index: 2, kind: input, shape index: {}]
  %s3 = inlined_call_operand.vmem [shape: bf16[400,128], index: 3, kind: input, shape index: {}]
  %s4 = inlined_call_operand.vmem [shape: f32[1,128], index: 4, kind: input, shape index: {}]
  %s5 = inlined_call_operand.hbm [shape: f32[8,128], index: 5, kind: output, shape index: {}]
  %s6 = sld [smem:[#allocation0]]
  $region30: #{vae_forward.1} parent=0
    _
  %s8 = ssub.s32 1, %s6
  %s9 = scalar_select 0, %s8, %s6
  $region1: #{vae_forward.1} parent=0
    #allocation2 [shape = 'u8[4096]{0}', space=vmem, size = 0x1000, scoped, tag = 'output window, operand 0, single buffered']
    #allocation3 [shape = 's32[1]{0}', space=sflag, size = 0x4, scoped, tag = 'scoped memory for vae_forward.1']
    %10 = vsyncpa [#allocation3], 0
    // Predicated region
    $region2: #{vae_forward.1} parent=1 // pred_check
      _
    $region3: #{vae_forward.1} parent=1 // pred_check_branch
      %12 = sbr.rel (0) target = $region5
    $region4: #{vae_forward.1} parent=1 // pred_region
      _
    $region5: #{vae_forward.1} parent=1 // pred_fallthru
      _
    // Predicated region
    $region6: #{vae_forward.1} parent=1 // pred_check
      _
    $region7: #{vae_forward.1} parent=1 // pred_check_branch
      %14 = sbr.rel (0) target = $region9
    $region8: #{vae_forward.1} parent=1 // pred_region
      _
    $region9: #{vae_forward.1} parent=1 // pred_fallthru
      _
    // Predicated region
    $region10: #{vae_forward.1} parent=1 // pred_check
      _
    $region11: #{vae_forward.1} parent=1 // pred_check_branch
      %16 = sbr.rel (0) target = $region13
    $region12: #{vae_forward.1} parent=1 // pred_region
      _
    $region13: #{vae_forward.1} parent=1 // pred_fallthru
      _
    // Predicated region
    $region14: #{vae_forward.1} parent=1 // pred_check
      _
    $region15: #{vae_forward.1} parent=1 // pred_check_branch
      %18 = sbr.rel (0) target = $region17
    $region16: #{vae_forward.1} parent=1 // pred_region
      _
    $region17: #{vae_forward.1} parent=1 // pred_fallthru
      _
    // Predicated region
    $region18: #{vae_forward.1} parent=1 // pred_check
      _
    $region19: #{vae_forward.1} parent=1 // pred_check_branch
      %20 = sbr.rel (0) target = $region21
    $region20: #{vae_forward.1} parent=1 // pred_region
      _
    $region21: #{vae_forward.1} parent=1 // pred_fallthru
      _
    %v22 = vld [vmem:[%s0] sm:$0xff]
    %v23 = vld [vmem:[%s0 + $0x8] sm:$0xff]
    %v24 = vld [vmem:[%s0 + $0x10] sm:$0xff]
    %v25 = vld [vmem:[%s0 + $0x18] sm:$0xf]
    %v26 = vld [vmem:[%s1] sm:$0xff]
    %v27 = vld [vmem:[%s1 + $0x8] sm:$0xff]
    %v28 = vld [vmem:[%s1 + $0x10] sm:$0xff]
    %v29 = vld [vmem:[%s1 + $0x18] sm:$0xff]
    %v30 = vld [vmem:[%s1 + $0x20] sm:$0xff]
    %v31 = vld [vmem:[%s1 + $0x28] sm:$0xff]
    %v32 = vld [vmem:[%s1 + $0x30] sm:$0xff]
    %v33 = vld [vmem:[%s1 + $0x38] sm:$0xff]
    %v34 = vld [vmem:[%s1 + $0x40] sm:$0xff]
    %v35 = vld [vmem:[%s1 + $0x48] sm:$0xff]
    %v36 = vld [vmem:[%s1 + $0x50] sm:$0xff]
    %v37 = vld [vmem:[%s1 + $0x58] sm:$0xff]
    %v38 = vld [vmem:[%s1 + $0x60] sm:$0xff]
    %v39 = vld [vmem:[%s1 + $0x68] sm:$0xff]
    %v40 = vld [vmem:[%s1 + $0x70] sm:$0xff]
    %v41 = vld [vmem:[%s1 + $0x78] sm:$0xff]
    %v42 = vld [vmem:[%s1 + $0x80] sm:$0xff]
    %v43 = vld [vmem:[%s1 + $0x88] sm:$0xff]
    %v44 = vld [vmem:[%s1 + $0x90] sm:$0xff]
    %v45 = vld [vmem:[%s1 + $0x98] sm:$0xff]
    %v46 = vld [vmem:[%s1 + $0xa0] sm:$0xff]
    %v47 = vld [vmem:[%s1 + $0xa8] sm:$0xff]
    %v48 = vld [vmem:[%s1 + $0xb0] sm:$0xff]
    %v49 = vld [vmem:[%s1 + $0xb8] sm:$0xff]
    %v50 = vld [vmem:[%s1 + $0xc0] sm:$0xff]
    %v51 = vld [vmem:[%s1 + $0xc8] sm:$0xff]
    %v52 = vld [vmem:[%s1 + $0xd0] sm:$0xff]
    %v53 = vld [vmem:[%s1 + $0xd8] sm:$0xff]
    %v54 = vld [vmem:[%s1 + $0xe0] sm:$0xff]
    %v55 = vld [vmem:[%s1 + $0xe8] sm:$0xff]
    %v56 = vld [vmem:[%s1 + $0xf0] sm:$0xff]
    %v57 = vld [vmem:[%s1 + $0xf8] sm:$0xff]
    %v58 = vld [vmem:[%s1 + $0x100] sm:$0xff]
    %v59 = vld [vmem:[%s1 + $0x108] sm:$0xff]
    %v60 = vld [vmem:[%s1 + $0x110] sm:$0xff]
    %v61 = vld [vmem:[%s1 + $0x118] sm:$0xff]
    %v62 = vld [vmem:[%s1 + $0x120] sm:$0xff]
    %v63 = vld [vmem:[%s1 + $0x128] sm:$0xff]
    %v64 = vld [vmem:[%s1 + $0x130] sm:$0xff]
    %v65 = vld [vmem:[%s1 + $0x138] sm:$0xff]
    %v66 = vld [vmem:[%s1 + $0x140] sm:$0xff]
    %v67 = vld [vmem:[%s1 + $0x148] sm:$0xff]
    %v68 = vld [vmem:[%s1 + $0x150] sm:$0xff]
    %v69 = vld [vmem:[%s1 + $0x158] sm:$0xff]
    %v70 = vld [vmem:[%s1 + $0x160] sm:$0xff]
    %v71 = vld [vmem:[%s1 + $0x168] sm:$0xff]
    %v72 = vld [vmem:[%s1 + $0x170] sm:$0xff]
    %v73 = vld [vmem:[%s1 + $0x178] sm:$0xff]
    %v74 = vld [vmem:[%s1 + $0x180] sm:$0xff]
    %v75 = vld [vmem:[%s1 + $0x188] sm:$0xff]
    %v76 = vld [vmem:[%s1 + $0x190] sm:$0xff]
    %v77 = vld [vmem:[%s1 + $0x198] sm:$0xff]
    %v78 = vld [vmem:[%s1 + $0x1a0] sm:$0xff]
    %v79 = vld [vmem:[%s1 + $0x1a8] sm:$0xff]
    %v80 = vld [vmem:[%s1 + $0x1b0] sm:$0xff]
    %v81 = vld [vmem:[%s1 + $0x1b8] sm:$0xff]
    %v82 = vld [vmem:[%s1 + $0x1c0] sm:$0xff]
    %v83 = vld [vmem:[%s1 + $0x1c8] sm:$0xff]
    %v84 = vld [vmem:[%s1 + $0x1d0] sm:$0xff]
    %v85 = vld [vmem:[%s1 + $0x1d8] sm:$0xff]
    %v86 = vld [vmem:[%s1 + $0x1e0] sm:$0xff]
    %v87 = vld [vmem:[%s1 + $0x1e8] sm:$0xff]
    %v88 = vld [vmem:[%s1 + $0x1f0] sm:$0xff]
    %v89 = vld [vmem:[%s1 + $0x1f8] sm:$0xff]
    %v90 = vld [vmem:[%s1 + $0x200] sm:$0xff]
    %v91 = vld [vmem:[%s1 + $0x208] sm:$0xff]
    %v92 = vld [vmem:[%s1 + $0x210] sm:$0xff]
    %v93 = vld [vmem:[%s1 + $0x218] sm:$0xff]
    %v94 = vld [vmem:[%s1 + $0x220] sm:$0xff]
    %v95 = vld [vmem:[%s1 + $0x228] sm:$0xff]
    %v96 = vld [vmem:[%s1 + $0x230] sm:$0xff]
    %v97 = vld [vmem:[%s1 + $0x238] sm:$0xff]
    %v98 = vld [vmem:[%s1 + $0x240] sm:$0xff]
    %v99 = vld [vmem:[%s1 + $0x248] sm:$0xff]
    %v100 = vld [vmem:[%s1 + $0x250] sm:$0xff]
    %v101 = vld [vmem:[%s1 + $0x258] sm:$0xff]
    %v102 = vld [vmem:[%s1 + $0x260] sm:$0xff]
    %v103 = vld [vmem:[%s1 + $0x268] sm:$0xff]
    %v104 = vld [vmem:[%s1 + $0x270] sm:$0xff]
    %v105 = vld [vmem:[%s1 + $0x278] sm:$0xff]
    %v106 = vld [vmem:[%s1 + $0x280] sm:$0xff]
    %v107 = vld [vmem:[%s1 + $0x288] sm:$0xff]
    %v108 = vld [vmem:[%s1 + $0x290] sm:$0xff]
    %v109 = vld [vmem:[%s1 + $0x298] sm:$0xff]
    %v110 = vld [vmem:[%s1 + $0x2a0] sm:$0xff]
    %v111 = vld [vmem:[%s1 + $0x2a8] sm:$0xff]
    %v112 = vld [vmem:[%s1 + $0x2b0] sm:$0xff]
    %v113 = vld [vmem:[%s1 + $0x2b8] sm:$0xff]
    %v114 = vld [vmem:[%s1 + $0x2c0] sm:$0xff]
    %v115 = vld [vmem:[%s1 + $0x2c8] sm:$0xff]
    %v116 = vld [vmem:[%s1 + $0x2d0] sm:$0xff]
    %v117 = vld [vmem:[%s1 + $0x2d8] sm:$0xff]
    %v118 = vld [vmem:[%s1 + $0x2e0] sm:$0xff]
    %v119 = vld [vmem:[%s1 + $0x2e8] sm:$0xff]
    %v120 = vld [vmem:[%s1 + $0x2f0] sm:$0xff]
    %v121 = vld [vmem:[%s1 + $0x2f8] sm:$0xff]
    %v122 = vld [vmem:[%s1 + $0x300] sm:$0xff]
    %v123 = vld [vmem:[%s1 + $0x308] sm:$0xff]
    %v124 = vld [vmem:[%s1 + $0x310] sm:$0xff]
    %v125 = vld [vmem:[%s1 + $0x318] sm:$0xff]
    %v126 = vld [vmem:[%s1 + $0x320] sm:$0xff]
    %v127 = vld [vmem:[%s1 + $0x328] sm:$0xff]
    %v128 = vld [vmem:[%s1 + $0x330] sm:$0xff]
    %v129 = vld [vmem:[%s1 + $0x338] sm:$0xff]
    %v130 = vld [vmem:[%s1 + $0x340] sm:$0xff]
    %v131 = vld [vmem:[%s1 + $0x348] sm:$0xff]
    %v132 = vld [vmem:[%s1 + $0x350] sm:$0xff]
    %v133 = vld [vmem:[%s1 + $0x358] sm:$0xff]
    %v134 = vld [vmem:[%s1 + $0x360] sm:$0xff]
    %v135 = vld [vmem:[%s1 + $0x368] sm:$0xff]
    %v136 = vld [vmem:[%s1 + $0x370] sm:$0xff]
    %v137 = vld [vmem:[%s1 + $0x378] sm:$0xff]
    %v138 = vld [vmem:[%s1 + $0x380] sm:$0xff]
    %v139 = vld [vmem:[%s1 + $0x388] sm:$0xff]
    %v140 = vld [vmem:[%s1 + $0x390] sm:$0xff]
    %v141 = vld [vmem:[%s1 + $0x398] sm:$0xff]
    %v142 = vld [vmem:[%s1 + $0x3a0] sm:$0xff]
    %v143 = vld [vmem:[%s1 + $0x3a8] sm:$0xff]
    %v144 = vld [vmem:[%s1 + $0x3b0] sm:$0xff]
    %v145 = vld [vmem:[%s1 + $0x3b8] sm:$0xff]
    %v146 = vld [vmem:[%s1 + $0x3c0] sm:$0xff]
    %v147 = vld [vmem:[%s1 + $0x3c8] sm:$0xff]
    %v148 = vld [vmem:[%s1 + $0x3d0] sm:$0xff]
    %v149 = vld [vmem:[%s1 + $0x3d8] sm:$0xff]
    %v150 = vld [vmem:[%s1 + $0x3e0] sm:$0xff]
    %v151 = vld [vmem:[%s1 + $0x3e8] sm:$0xff]
    %v152 = vld [vmem:[%s1 + $0x3f0] sm:$0xff]
    %v153 = vld [vmem:[%s1 + $0x3f8] sm:$0xff]
    %v154 = vld [vmem:[%s1 + $0x400] sm:$0xff]
    %v155 = vld [vmem:[%s1 + $0x408] sm:$0xff]
    %v156 = vld [vmem:[%s1 + $0x410] sm:$0xff]
    %v157 = vld [vmem:[%s1 + $0x418] sm:$0xff]
    %v158 = vld [vmem:[%s1 + $0x420] sm:$0xff]
    %v159 = vld [vmem:[%s1 + $0x428] sm:$0xff]
    %v160 = vld [vmem:[%s1 + $0x430] sm:$0xff]
    %v161 = vld [vmem:[%s1 + $0x438] sm:$0xff]
    %v162 = vld [vmem:[%s1 + $0x440] sm:$0xff]
    %v163 = vld [vmem:[%s1 + $0x448] sm:$0xff]
    %v164 = vld [vmem:[%s1 + $0x450] sm:$0xff]
    %v165 = vld [vmem:[%s1 + $0x458] sm:$0xff]
    %v166 = vld [vmem:[%s1 + $0x460] sm:$0xff]
    %v167 = vld [vmem:[%s1 + $0x468] sm:$0xff]
    %v168 = vld [vmem:[%s1 + $0x470] sm:$0xff]
    %v169 = vld [vmem:[%s1 + $0x478] sm:$0xff]
    %v170 = vld [vmem:[%s1 + $0x480] sm:$0xff]
    %v171 = vld [vmem:[%s1 + $0x488] sm:$0xff]
    %v172 = vld [vmem:[%s1 + $0x490] sm:$0xff]
    %v173 = vld [vmem:[%s1 + $0x498] sm:$0xff]
    %v174 = vld [vmem:[%s1 + $0x4a0] sm:$0xff]
    %v175 = vld [vmem:[%s1 + $0x4a8] sm:$0xff]
    %v176 = vld [vmem:[%s1 + $0x4b0] sm:$0xff]
    %v177 = vld [vmem:[%s1 + $0x4b8] sm:$0xff]
    %v178 = vld [vmem:[%s1 + $0x4c0] sm:$0xff]
    %v179 = vld [vmem:[%s1 + $0x4c8] sm:$0xff]
    %v180 = vld [vmem:[%s1 + $0x4d0] sm:$0xff]
    %v181 = vld [vmem:[%s1 + $0x4d8] sm:$0xff]
    %v182 = vld [vmem:[%s1 + $0x4e0] sm:$0xff]
    %v183 = vld [vmem:[%s1 + $0x4e8] sm:$0xff]
    %v184 = vld [vmem:[%s1 + $0x4f0] sm:$0xff]
    %v185 = vld [vmem:[%s1 + $0x4f8] sm:$0xff]
    %v186 = vld [vmem:[%s1 + $0x500] sm:$0xff]
    %v187 = vld [vmem:[%s1 + $0x508] sm:$0xff]
    %v188 = vld [vmem:[%s1 + $0x510] sm:$0xff]
    %v189 = vld [vmem:[%s1 + $0x518] sm:$0xff]
    %v190 = vld [vmem:[%s1 + $0x520] sm:$0xff]
    %v191 = vld [vmem:[%s1 + $0x528] sm:$0xff]
    %v192 = vld [vmem:[%s1 + $0x530] sm:$0xff]
    %v193 = vld [vmem:[%s1 + $0x538] sm:$0xff]
    %v194 = vld [vmem:[%s1 + $0x540] sm:$0xff]
    %v195 = vld [vmem:[%s1 + $0x548] sm:$0xff]
    %v196 = vld [vmem:[%s1 + $0x550] sm:$0xff]
    %v197 = vld [vmem:[%s1 + $0x558] sm:$0xff]
    %v198 = vld [vmem:[%s1 + $0x560] sm:$0xff]
    %v199 = vld [vmem:[%s1 + $0x568] sm:$0xff]
    %v200 = vld [vmem:[%s1 + $0x570] sm:$0xff]
    %v201 = vld [vmem:[%s1 + $0x578] sm:$0xff]
    %v202 = vld [vmem:[%s1 + $0x580] sm:$0xff]
    %v203 = vld [vmem:[%s1 + $0x588] sm:$0xff]
    %v204 = vld [vmem:[%s1 + $0x590] sm:$0xff]
    %v205 = vld [vmem:[%s1 + $0x598] sm:$0xff]
    %v206 = vld [vmem:[%s1 + $0x5a0] sm:$0xff]
    %v207 = vld [vmem:[%s1 + $0x5a8] sm:$0xff]
    %v208 = vld [vmem:[%s1 + $0x5b0] sm:$0xff]
    %v209 = vld [vmem:[%s1 + $0x5b8] sm:$0xff]
    %v210 = vld [vmem:[%s1 + $0x5c0] sm:$0xff]
    %v211 = vld [vmem:[%s1 + $0x5c8] sm:$0xff]
    %v212 = vld [vmem:[%s1 + $0x5d0] sm:$0xff]
    %v213 = vld [vmem:[%s1 + $0x5d8] sm:$0xff]
    %v214 = vld [vmem:[%s1 + $0x5e0] sm:$0xff]
    %v215 = vld [vmem:[%s1 + $0x5e8] sm:$0xff]
    %v216 = vld [vmem:[%s1 + $0x5f0] sm:$0xff]
    %v217 = vld [vmem:[%s1 + $0x5f8] sm:$0xff]
    %v218 = vld [vmem:[%s1 + $0x600] sm:$0xff]
    %v219 = vld [vmem:[%s1 + $0x608] sm:$0xff]
    %v220 = vld [vmem:[%s1 + $0x610] sm:$0xff]
    %v221 = vld [vmem:[%s1 + $0x618] sm:$0xff]
    %v222 = vld [vmem:[%s2] sm:$0xf]
    %v224 = vperm.slane %v222, 0
    %v225 = vperm.slane %v222, 1
    %v226 = vperm.slane %v222, 2
    %v227 = vperm.slane %v222, 3
    %v236 = vunpack.c.l.b16 %v22
    %v237 = vunpack.c.h.b16 %v22
    %v238 = vunpack.c.l.b16 %v23
    %v239 = vunpack.c.h.b16 %v23
    %v240 = vunpack.c.l.b16 %v24
    %v241 = vunpack.c.h.b16 %v24
    %v242 = vunpack.c.l.b16 %v25
    %v243 = vpack.c.b16 %v236, %v236
    %v244 = vpack.c.b16 %v237, %v237
    %v245 = vpack.c.b16 %v238, %v238
    %v246 = vpack.c.b16 %v239, %v239
    %v247 = vpack.c.b16 %v240, %v240
    %v248 = vpack.c.b16 %v241, %v241
    %v249 = vpack.c.b16 %v242, %v242
    %v452 = vunpack.c.l.b16 %v26
    %v453 = vunpack.c.h.b16 %v26
    %v454 = vunpack.c.l.b16 %v27
    %v455 = vunpack.c.h.b16 %v27
    %v456 = vunpack.c.l.b16 %v28
    %v457 = vunpack.c.h.b16 %v28
    %v458 = vunpack.c.l.b16 %v29
    %v459 = vunpack.c.h.b16 %v29
    %v460 = vunpack.c.l.b16 %v30
    %v461 = vunpack.c.h.b16 %v30
    %v462 = vunpack.c.l.b16 %v31
    %v463 = vunpack.c.h.b16 %v31
    %v464 = vunpack.c.l.b16 %v32
    %v465 = vunpack.c.h.b16 %v32
    %v466 = vunpack.c.l.b16 %v33
    %v467 = vunpack.c.h.b16 %v33
    %v468 = vunpack.c.l.b16 %v34
    %v469 = vunpack.c.h.b16 %v34
    %v470 = vunpack.c.l.b16 %v35
    %v471 = vunpack.c.h.b16 %v35
    %v472 = vunpack.c.l.b16 %v36
    %v473 = vunpack.c.h.b16 %v36
    %v474 = vunpack.c.l.b16 %v37
    %v475 = vunpack.c.h.b16 %v37
    %v476 = vunpack.c.l.b16 %v38
    %v477 = vunpack.c.h.b16 %v38
    %v478 = vunpack.c.l.b16 %v39
    %v479 = vunpack.c.h.b16 %v39
    %v480 = vunpack.c.l.b16 %v40
    %v481 = vunpack.c.h.b16 %v40
    %v482 = vunpack.c.l.b16 %v41
    %v483 = vunpack.c.h.b16 %v41
    %v484 = vunpack.c.l.b16 %v42
    %v485 = vunpack.c.h.b16 %v42
    %v486 = vunpack.c.l.b16 %v43
    %v487 = vunpack.c.h.b16 %v43
    %v488 = vunpack.c.l.b16 %v44
    %v489 = vunpack.c.h.b16 %v44
    %v490 = vunpack.c.l.b16 %v45
    %v491 = vunpack.c.h.b16 %v45
    %v492 = vunpack.c.l.b16 %v46
    %v493 = vunpack.c.h.b16 %v46
    %v494 = vunpack.c.l.b16 %v47
    %v495 = vunpack.c.h.b16 %v47
    %v496 = vunpack.c.l.b16 %v48
    %v497 = vunpack.c.h.b16 %v48
    %v498 = vunpack.c.l.b16 %v49
    %v499 = vunpack.c.h.b16 %v49
    %v500 = vunpack.c.l.b16 %v50
    %v501 = vunpack.c.h.b16 %v50
    %v502 = vunpack.c.l.b16 %v51
    %v503 = vunpack.c.h.b16 %v51
    %v504 = vunpack.c.l.b16 %v52
    %v505 = vunpack.c.h.b16 %v52
    %v506 = vunpack.c.l.b16 %v53
    %v507 = vunpack.c.h.b16 %v53
    %v508 = vunpack.c.l.b16 %v54
    %v509 = vunpack.c.h.b16 %v54
    %v510 = vunpack.c.l.b16 %v55
    %v511 = vunpack.c.h.b16 %v55
    %v512 = vunpack.c.l.b16 %v56
    %v513 = vunpack.c.h.b16 %v56
    %v514 = vunpack.c.l.b16 %v57
    %v515 = vunpack.c.h.b16 %v57
    %v516 = vunpack.c.l.b16 %v58
    %v517 = vunpack.c.h.b16 %v58
    %v518 = vunpack.c.l.b16 %v59
    %v519 = vunpack.c.h.b16 %v59
    %v520 = vunpack.c.l.b16 %v60
    %v521 = vunpack.c.h.b16 %v60
    %v522 = vunpack.c.l.b16 %v61
    %v523 = vunpack.c.h.b16 %v61
    %v524 = vunpack.c.l.b16 %v62
    %v525 = vunpack.c.h.b16 %v62
    %v526 = vunpack.c.l.b16 %v63
    %v527 = vunpack.c.h.b16 %v63
    %v528 = vunpack.c.l.b16 %v64
    %v529 = vunpack.c.h.b16 %v64
    %v530 = vunpack.c.l.b16 %v65
    %v531 = vunpack.c.h.b16 %v65
    %v532 = vunpack.c.l.b16 %v66
    %v533 = vunpack.c.h.b16 %v66
    %v534 = vunpack.c.l.b16 %v67
    %v535 = vunpack.c.h.b16 %v67
    %v536 = vunpack.c.l.b16 %v68
    %v537 = vunpack.c.h.b16 %v68
    %v538 = vunpack.c.l.b16 %v69
    %v539 = vunpack.c.h.b16 %v69
    %v540 = vunpack.c.l.b16 %v70
    %v541 = vunpack.c.h.b16 %v70
    %v542 = vunpack.c.l.b16 %v71
    %v543 = vunpack.c.h.b16 %v71
    %v544 = vunpack.c.l.b16 %v72
    %v545 = vunpack.c.h.b16 %v72
    %v546 = vunpack.c.l.b16 %v73
    %v547 = vunpack.c.h.b16 %v73
    %v548 = vunpack.c.l.b16 %v74
    %v549 = vunpack.c.h.b16 %v74
    %v550 = vunpack.c.l.b16 %v75
    %v551 = vunpack.c.h.b16 %v75
    %v552 = vunpack.c.l.b16 %v76
    %v553 = vunpack.c.h.b16 %v76
    %v554 = vunpack.c.l.b16 %v77
    %v555 = vunpack.c.h.b16 %v77
    %v556 = vunpack.c.l.b16 %v78
    %v557 = vunpack.c.h.b16 %v78
    %v558 = vunpack.c.l.b16 %v79
    %v559 = vunpack.c.h.b16 %v79
    %v560 = vunpack.c.l.b16 %v80
    %v561 = vunpack.c.h.b16 %v80
    %v562 = vunpack.c.l.b16 %v81
    %v563 = vunpack.c.h.b16 %v81
    %v564 = vunpack.c.l.b16 %v82
    %v565 = vunpack.c.h.b16 %v82
    %v566 = vunpack.c.l.b16 %v83
    %v567 = vunpack.c.h.b16 %v83
    %v568 = vunpack.c.l.b16 %v84
    %v569 = vunpack.c.h.b16 %v84
    %v570 = vunpack.c.l.b16 %v85
    %v571 = vunpack.c.h.b16 %v85
    %v572 = vunpack.c.l.b16 %v86
    %v573 = vunpack.c.h.b16 %v86
    %v574 = vunpack.c.l.b16 %v87
    %v575 = vunpack.c.h.b16 %v87
    %v576 = vunpack.c.l.b16 %v88
    %v577 = vunpack.c.h.b16 %v88
    %v578 = vunpack.c.l.b16 %v89
    %v579 = vunpack.c.h.b16 %v89
    %v580 = vunpack.c.l.b16 %v90
    %v581 = vunpack.c.h.b16 %v90
    %v582 = vunpack.c.l.b16 %v91
    %v583 = vunpack.c.h.b16 %v91
    %v584 = vunpack.c.l.b16 %v92
    %v585 = vunpack.c.h.b16 %v92
    %v586 = vunpack.c.l.b16 %v93
    %v587 = vunpack.c.h.b16 %v93
    %v588 = vunpack.c.l.b16 %v94
    %v589 = vunpack.c.h.b16 %v94
    %v590 = vunpack.c.l.b16 %v95
    %v591 = vunpack.c.h.b16 %v95
    %v592 = vunpack.c.l.b16 %v96
    %v593 = vunpack.c.h.b16 %v96
    %v594 = vunpack.c.l.b16 %v97
    %v595 = vunpack.c.h.b16 %v97
    %v596 = vunpack.c.l.b16 %v98
    %v597 = vunpack.c.h.b16 %v98
    %v598 = vunpack.c.l.b16 %v99
    %v599 = vunpack.c.h.b16 %v99
    %v600 = vunpack.c.l.b16 %v100
    %v601 = vunpack.c.h.b16 %v100
    %v602 = vunpack.c.l.b16 %v101
    %v603 = vunpack.c.h.b16 %v101
    %v604 = vunpack.c.l.b16 %v102
    %v605 = vunpack.c.h.b16 %v102
    %v606 = vunpack.c.l.b16 %v103
    %v607 = vunpack.c.h.b16 %v103
    %v608 = vunpack.c.l.b16 %v104
    %v609 = vunpack.c.h.b16 %v104
    %v610 = vunpack.c.l.b16 %v105
    %v611 = vunpack.c.h.b16 %v105
    %v612 = vunpack.c.l.b16 %v106
    %v613 = vunpack.c.h.b16 %v106
    %v614 = vunpack.c.l.b16 %v107
    %v615 = vunpack.c.h.b16 %v107
    %v616 = vunpack.c.l.b16 %v108
    %v617 = vunpack.c.h.b16 %v108
    %v618 = vunpack.c.l.b16 %v109
    %v619 = vunpack.c.h.b16 %v109
    %v620 = vunpack.c.l.b16 %v110
    %v621 = vunpack.c.h.b16 %v110
    %v622 = vunpack.c.l.b16 %v111
    %v623 = vunpack.c.h.b16 %v111
    %v624 = vunpack.c.l.b16 %v112
    %v625 = vunpack.c.h.b16 %v112
    %v626 = vunpack.c.l.b16 %v113
    %v627 = vunpack.c.h.b16 %v113
    %v628 = vunpack.c.l.b16 %v114
    %v629 = vunpack.c.h.b16 %v114
    %v630 = vunpack.c.l.b16 %v115
    %v631 = vunpack.c.h.b16 %v115
    %v632 = vunpack.c.l.b16 %v116
    %v633 = vunpack.c.h.b16 %v116
    %v634 = vunpack.c.l.b16 %v117
    %v635 = vunpack.c.h.b16 %v117
    %v636 = vunpack.c.l.b16 %v118
    %v637 = vunpack.c.h.b16 %v118
    %v638 = vunpack.c.l.b16 %v119
    %v639 = vunpack.c.h.b16 %v119
    %v640 = vunpack.c.l.b16 %v120
    %v641 = vunpack.c.h.b16 %v120
    %v642 = vunpack.c.l.b16 %v121
    %v643 = vunpack.c.h.b16 %v121
    %v644 = vunpack.c.l.b16 %v122
    %v645 = vunpack.c.h.b16 %v122
    %v646 = vunpack.c.l.b16 %v123
    %v647 = vunpack.c.h.b16 %v123
    %v648 = vunpack.c.l.b16 %v124
    %v649 = vunpack.c.h.b16 %v124
    %v650 = vunpack.c.l.b16 %v125
    %v651 = vunpack.c.h.b16 %v125
    %v652 = vunpack.c.l.b16 %v126
    %v653 = vunpack.c.h.b16 %v126
    %v654 = vunpack.c.l.b16 %v127
    %v655 = vunpack.c.h.b16 %v127
    %v656 = vunpack.c.l.b16 %v128
    %v657 = vunpack.c.h.b16 %v128
    %v658 = vunpack.c.l.b16 %v129
    %v659 = vunpack.c.h.b16 %v129
    %v660 = vunpack.c.l.b16 %v130
    %v661 = vunpack.c.h.b16 %v130
    %v662 = vunpack.c.l.b16 %v131
    %v663 = vunpack.c.h.b16 %v131
    %v664 = vunpack.c.l.b16 %v132
    %v665 = vunpack.c.h.b16 %v132
    %v666 = vunpack.c.l.b16 %v133
    %v667 = vunpack.c.h.b16 %v133
    %v668 = vunpack.c.l.b16 %v134
    %v669 = vunpack.c.h.b16 %v134
    %v670 = vunpack.c.l.b16 %v135
    %v671 = vunpack.c.h.b16 %v135
    %v672 = vunpack.c.l.b16 %v136
    %v673 = vunpack.c.h.b16 %v136
    %v674 = vunpack.c.l.b16 %v137
    %v675 = vunpack.c.h.b16 %v137
    %v676 = vunpack.c.l.b16 %v138
    %v677 = vunpack.c.h.b16 %v138
    %v678 = vunpack.c.l.b16 %v139
    %v679 = vunpack.c.h.b16 %v139
    %v680 = vunpack.c.l.b16 %v140
    %v681 = vunpack.c.h.b16 %v140
    %v682 = vunpack.c.l.b16 %v141
    %v683 = vunpack.c.h.b16 %v141
    %v684 = vunpack.c.l.b16 %v142
    %v685 = vunpack.c.h.b16 %v142
    %v686 = vunpack.c.l.b16 %v143
    %v687 = vunpack.c.h.b16 %v143
    %v688 = vunpack.c.l.b16 %v144
    %v689 = vunpack.c.h.b16 %v144
    %v690 = vunpack.c.l.b16 %v145
    %v691 = vunpack.c.h.b16 %v145
    %v692 = vunpack.c.l.b16 %v146
    %v693 = vunpack.c.h.b16 %v146
    %v694 = vunpack.c.l.b16 %v147
    %v695 = vunpack.c.h.b16 %v147
    %v696 = vunpack.c.l.b16 %v148
    %v697 = vunpack.c.h.b16 %v148
    %v698 = vunpack.c.l.b16 %v149
    %v699 = vunpack.c.h.b16 %v149
    %v700 = vunpack.c.l.b16 %v150
    %v701 = vunpack.c.h.b16 %v150
    %v702 = vunpack.c.l.b16 %v151
    %v703 = vunpack.c.h.b16 %v151
    %v704 = vunpack.c.l.b16 %v152
    %v705 = vunpack.c.h.b16 %v152
    %v706 = vunpack.c.l.b16 %v153
    %v707 = vunpack.c.h.b16 %v153
    %v708 = vunpack.c.l.b16 %v154
    %v709 = vunpack.c.h.b16 %v154
    %v710 = vunpack.c.l.b16 %v155
    %v711 = vunpack.c.h.b16 %v155
    %v712 = vunpack.c.l.b16 %v156
    %v713 = vunpack.c.h.b16 %v156
    %v714 = vunpack.c.l.b16 %v157
    %v715 = vunpack.c.h.b16 %v157
    %v716 = vunpack.c.l.b16 %v158
    %v717 = vunpack.c.h.b16 %v158
    %v718 = vunpack.c.l.b16 %v159
    %v719 = vunpack.c.h.b16 %v159
    %v720 = vunpack.c.l.b16 %v160
    %v721 = vunpack.c.h.b16 %v160
    %v722 = vunpack.c.l.b16 %v161
    %v723 = vunpack.c.h.b16 %v161
    %v724 = vunpack.c.l.b16 %v162
    %v725 = vunpack.c.h.b16 %v162
    %v726 = vunpack.c.l.b16 %v163
    %v727 = vunpack.c.h.b16 %v163
    %v728 = vunpack.c.l.b16 %v164
    %v729 = vunpack.c.h.b16 %v164
    %v730 = vunpack.c.l.b16 %v165
    %v731 = vunpack.c.h.b16 %v165
    %v732 = vunpack.c.l.b16 %v166
    %v733 = vunpack.c.h.b16 %v166
    %v734 = vunpack.c.l.b16 %v167
    %v735 = vunpack.c.h.b16 %v167
    %v736 = vunpack.c.l.b16 %v168
    %v737 = vunpack.c.h.b16 %v168
    %v738 = vunpack.c.l.b16 %v169
    %v739 = vunpack.c.h.b16 %v169
    %v740 = vunpack.c.l.b16 %v170
    %v741 = vunpack.c.h.b16 %v170
    %v742 = vunpack.c.l.b16 %v171
    %v743 = vunpack.c.h.b16 %v171
    %v744 = vunpack.c.l.b16 %v172
    %v745 = vunpack.c.h.b16 %v172
    %v746 = vunpack.c.l.b16 %v173
    %v747 = vunpack.c.h.b16 %v173
    %v748 = vunpack.c.l.b16 %v174
    %v749 = vunpack.c.h.b16 %v174
    %v750 = vunpack.c.l.b16 %v175
    %v751 = vunpack.c.h.b16 %v175
    %v752 = vunpack.c.l.b16 %v176
    %v753 = vunpack.c.h.b16 %v176
    %v754 = vunpack.c.l.b16 %v177
    %v755 = vunpack.c.h.b16 %v177
    %v756 = vunpack.c.l.b16 %v178
    %v757 = vunpack.c.h.b16 %v178
    %v758 = vunpack.c.l.b16 %v179
    %v759 = vunpack.c.h.b16 %v179
    %v760 = vunpack.c.l.b16 %v180
    %v761 = vunpack.c.h.b16 %v180
    %v762 = vunpack.c.l.b16 %v181
    %v763 = vunpack.c.h.b16 %v181
    %v764 = vunpack.c.l.b16 %v182
    %v765 = vunpack.c.h.b16 %v182
    %v766 = vunpack.c.l.b16 %v183
    %v767 = vunpack.c.h.b16 %v183
    %v768 = vunpack.c.l.b16 %v184
    %v769 = vunpack.c.h.b16 %v184
    %v770 = vunpack.c.l.b16 %v185
    %v771 = vunpack.c.h.b16 %v185
    %v772 = vunpack.c.l.b16 %v186
    %v773 = vunpack.c.h.b16 %v186
    %v774 = vunpack.c.l.b16 %v187
    %v775 = vunpack.c.h.b16 %v187
    %v776 = vunpack.c.l.b16 %v188
    %v777 = vunpack.c.h.b16 %v188
    %v778 = vunpack.c.l.b16 %v189
    %v779 = vunpack.c.h.b16 %v189
    %v780 = vunpack.c.l.b16 %v190
    %v781 = vunpack.c.h.b16 %v190
    %v782 = vunpack.c.l.b16 %v191
    %v783 = vunpack.c.h.b16 %v191
    %v784 = vunpack.c.l.b16 %v192
    %v785 = vunpack.c.h.b16 %v192
    %v786 = vunpack.c.l.b16 %v193
    %v787 = vunpack.c.h.b16 %v193
    %v788 = vunpack.c.l.b16 %v194
    %v789 = vunpack.c.h.b16 %v194
    %v790 = vunpack.c.l.b16 %v195
    %v791 = vunpack.c.h.b16 %v195
    %v792 = vunpack.c.l.b16 %v196
    %v793 = vunpack.c.h.b16 %v196
    %v794 = vunpack.c.l.b16 %v197
    %v795 = vunpack.c.h.b16 %v197
    %v796 = vunpack.c.l.b16 %v198
    %v797 = vunpack.c.h.b16 %v198
    %v798 = vunpack.c.l.b16 %v199
    %v799 = vunpack.c.h.b16 %v199
    %v800 = vunpack.c.l.b16 %v200
    %v801 = vunpack.c.h.b16 %v200
    %v802 = vunpack.c.l.b16 %v201
    %v803 = vunpack.c.h.b16 %v201
    %v804 = vunpack.c.l.b16 %v202
    %v805 = vunpack.c.h.b16 %v202
    %v806 = vunpack.c.l.b16 %v203
    %v807 = vunpack.c.h.b16 %v203
    %v808 = vunpack.c.l.b16 %v204
    %v809 = vunpack.c.h.b16 %v204
    %v810 = vunpack.c.l.b16 %v205
    %v811 = vunpack.c.h.b16 %v205
    %v812 = vunpack.c.l.b16 %v206
    %v813 = vunpack.c.h.b16 %v206
    %v814 = vunpack.c.l.b16 %v207
    %v815 = vunpack.c.h.b16 %v207
    %v816 = vunpack.c.l.b16 %v208
    %v817 = vunpack.c.h.b16 %v208
    %v818 = vunpack.c.l.b16 %v209
    %v819 = vunpack.c.h.b16 %v209
    %v820 = vunpack.c.l.b16 %v210
    %v821 = vunpack.c.h.b16 %v210
    %v822 = vunpack.c.l.b16 %v211
    %v823 = vunpack.c.h.b16 %v211
    %v824 = vunpack.c.l.b16 %v212
    %v825 = vunpack.c.h.b16 %v212
    %v826 = vunpack.c.l.b16 %v213
    %v827 = vunpack.c.h.b16 %v213
    %v828 = vunpack.c.l.b16 %v214
    %v829 = vunpack.c.h.b16 %v214
    %v830 = vunpack.c.l.b16 %v215
    %v831 = vunpack.c.h.b16 %v215
    %v832 = vunpack.c.l.b16 %v216
    %v833 = vunpack.c.h.b16 %v216
    %v834 = vunpack.c.l.b16 %v217
    %v835 = vunpack.c.h.b16 %v217
    %v836 = vunpack.c.l.b16 %v218
    %v837 = vunpack.c.h.b16 %v218
    %v838 = vunpack.c.l.b16 %v219
    %v839 = vunpack.c.h.b16 %v219
    %v840 = vunpack.c.l.b16 %v220
    %v841 = vunpack.c.h.b16 %v220
    %v842 = vunpack.c.l.b16 %v221
    %v843 = vunpack.c.h.b16 %v221
    %v844 = vpack.c.b16 %v456, %v452
    %v845 = vpack.c.b16 %v457, %v453
    %v846 = vpack.c.b16 %v458, %v454
    %v847 = vpack.c.b16 %v459, %v455
    %v848 = vpack.c.b16 %v464, %v460
    %v849 = vpack.c.b16 %v465, %v461
    %v850 = vpack.c.b16 %v466, %v462
    %v851 = vpack.c.b16 %v467, %v463
    %v852 = vpack.c.b16 %v472, %v468
    %v853 = vpack.c.b16 %v473, %v469
    %v854 = vpack.c.b16 %v474, %v470
    %v855 = vpack.c.b16 %v475, %v471
    %v856 = vpack.c.b16 %v480, %v476
    %v857 = vpack.c.b16 %v481, %v477
    %v858 = vpack.c.b16 %v482, %v478
    %v859 = vpack.c.b16 %v483, %v479
    %v860 = vpack.c.b16 %v488, %v484
    %v861 = vpack.c.b16 %v489, %v485
    %v862 = vpack.c.b16 %v490, %v486
    %v863 = vpack.c.b16 %v491, %v487
    %v864 = vpack.c.b16 %v496, %v492
    %v865 = vpack.c.b16 %v497, %v493
    %v866 = vpack.c.b16 %v498, %v494
    %v867 = vpack.c.b16 %v499, %v495
    %v868 = vpack.c.b16 %v504, %v500
    %v869 = vpack.c.b16 %v505, %v501
    %v870 = vpack.c.b16 %v506, %v502
    %v871 = vpack.c.b16 %v507, %v503
    %v872 = vpack.c.b16 %v512, %v508
    %v873 = vpack.c.b16 %v513, %v509
    %v874 = vpack.c.b16 %v514, %v510
    %v875 = vpack.c.b16 %v515, %v511
    %v876 = vpack.c.b16 %v520, %v516
    %v877 = vpack.c.b16 %v521, %v517
    %v878 = vpack.c.b16 %v522, %v518
    %v879 = vpack.c.b16 %v523, %v519
    %v880 = vpack.c.b16 %v528, %v524
    %v881 = vpack.c.b16 %v529, %v525
    %v882 = vpack.c.b16 %v530, %v526
    %v883 = vpack.c.b16 %v531, %v527
    %v884 = vpack.c.b16 %v536, %v532
    %v885 = vpack.c.b16 %v537, %v533
    %v886 = vpack.c.b16 %v538, %v534
    %v887 = vpack.c.b16 %v539, %v535
    %v888 = vpack.c.b16 %v544, %v540
    %v889 = vpack.c.b16 %v545, %v541
    %v890 = vpack.c.b16 %v546, %v542
    %v891 = vpack.c.b16 %v547, %v543
    %v892 = vpack.c.b16 %v552, %v548
    %v893 = vpack.c.b16 %v553, %v549
    %v894 = vpack.c.b16 %v554, %v550
    %v895 = vpack.c.b16 %v555, %v551
    %v896 = vpack.c.b16 %v560, %v556
    %v897 = vpack.c.b16 %v561, %v557
    %v898 = vpack.c.b16 %v562, %v558
    %v899 = vpack.c.b16 %v563, %v559
    %v900 = vpack.c.b16 %v568, %v564
    %v901 = vpack.c.b16 %v569, %v565
    %v902 = vpack.c.b16 %v570, %v566
    %v903 = vpack.c.b16 %v571, %v567
    %v904 = vpack.c.b16 %v576, %v572
    %v905 = vpack.c.b16 %v577, %v573
    %v906 = vpack.c.b16 %v578, %v574
    %v907 = vpack.c.b16 %v579, %v575
    %v908 = vpack.c.b16 %v584, %v580
    %v909 = vpack.c.b16 %v585, %v581
    %v910 = vpack.c.b16 %v586, %v582
    %v911 = vpack.c.b16 %v587, %v583
    %v912 = vpack.c.b16 %v592, %v588
    %v913 = vpack.c.b16 %v593, %v589
    %v914 = vpack.c.b16 %v594, %v590
    %v915 = vpack.c.b16 %v595, %v591
    %v916 = vpack.c.b16 %v600, %v596
    %v917 = vpack.c.b16 %v601, %v597
    %v918 = vpack.c.b16 %v602, %v598
    %v919 = vpack.c.b16 %v603, %v599
    %v920 = vpack.c.b16 %v608, %v604
    %v921 = vpack.c.b16 %v609, %v605
    %v922 = vpack.c.b16 %v610, %v606
    %v923 = vpack.c.b16 %v611, %v607
    %v924 = vpack.c.b16 %v616, %v612
    %v925 = vpack.c.b16 %v617, %v613
    %v926 = vpack.c.b16 %v618, %v614
    %v927 = vpack.c.b16 %v619, %v615
    %v928 = vpack.c.b16 %v624, %v620
    %v929 = vpack.c.b16 %v625, %v621
    %v930 = vpack.c.b16 %v626, %v622
    %v931 = vpack.c.b16 %v627, %v623
    %v932 = vpack.c.b16 %v632, %v628
    %v933 = vpack.c.b16 %v633, %v629
    %v934 = vpack.c.b16 %v634, %v630
    %v935 = vpack.c.b16 %v635, %v631
    %v936 = vpack.c.b16 %v640, %v636
    %v937 = vpack.c.b16 %v641, %v637
    %v938 = vpack.c.b16 %v642, %v638
    %v939 = vpack.c.b16 %v643, %v639
    %v940 = vpack.c.b16 %v648, %v644
    %v941 = vpack.c.b16 %v649, %v645
    %v942 = vpack.c.b16 %v650, %v646
    %v943 = vpack.c.b16 %v651, %v647
    %v944 = vpack.c.b16 %v656, %v652
    %v945 = vpack.c.b16 %v657, %v653
    %v946 = vpack.c.b16 %v658, %v654
    %v947 = vpack.c.b16 %v659, %v655
    %v948 = vpack.c.b16 %v664, %v660
    %v949 = vpack.c.b16 %v665, %v661
    %v950 = vpack.c.b16 %v666, %v662
    %v951 = vpack.c.b16 %v667, %v663
    %v952 = vpack.c.b16 %v672, %v668
    %v953 = vpack.c.b16 %v673, %v669
    %v954 = vpack.c.b16 %v674, %v670
    %v955 = vpack.c.b16 %v675, %v671
    %v956 = vpack.c.b16 %v680, %v676
    %v957 = vpack.c.b16 %v681, %v677
    %v958 = vpack.c.b16 %v682, %v678
    %v959 = vpack.c.b16 %v683, %v679
    %v960 = vpack.c.b16 %v688, %v684
    %v961 = vpack.c.b16 %v689, %v685
    %v962 = vpack.c.b16 %v690, %v686
    %v963 = vpack.c.b16 %v691, %v687
    %v964 = vpack.c.b16 %v696, %v692
    %v965 = vpack.c.b16 %v697, %v693
    %v966 = vpack.c.b16 %v698, %v694
    %v967 = vpack.c.b16 %v699, %v695
    %v968 = vpack.c.b16 %v704, %v700
    %v969 = vpack.c.b16 %v705, %v701
    %v970 = vpack.c.b16 %v706, %v702
    %v971 = vpack.c.b16 %v707, %v703
    %v972 = vpack.c.b16 %v712, %v708
    %v973 = vpack.c.b16 %v713, %v709
    %v974 = vpack.c.b16 %v714, %v710
    %v975 = vpack.c.b16 %v715, %v711
    %v976 = vpack.c.b16 %v720, %v716
    %v977 = vpack.c.b16 %v721, %v717
    %v978 = vpack.c.b16 %v722, %v718
    %v979 = vpack.c.b16 %v723, %v719
    %v980 = vpack.c.b16 %v728, %v724
    %v981 = vpack.c.b16 %v729, %v725
    %v982 = vpack.c.b16 %v730, %v726
    %v983 = vpack.c.b16 %v731, %v727
    %v984 = vpack.c.b16 %v736, %v732
    %v985 = vpack.c.b16 %v737, %v733
    %v986 = vpack.c.b16 %v738, %v734
    %v987 = vpack.c.b16 %v739, %v735
    %v988 = vpack.c.b16 %v744, %v740
    %v989 = vpack.c.b16 %v745, %v741
    %v990 = vpack.c.b16 %v746, %v742
    %v991 = vpack.c.b16 %v747, %v743
    %v992 = vpack.c.b16 %v752, %v748
    %v993 = vpack.c.b16 %v753, %v749
    %v994 = vpack.c.b16 %v754, %v750
    %v995 = vpack.c.b16 %v755, %v751
    %v996 = vpack.c.b16 %v760, %v756
    %v997 = vpack.c.b16 %v761, %v757
    %v998 = vpack.c.b16 %v762, %v758
    %v999 = vpack.c.b16 %v763, %v759
    %v1000 = vpack.c.b16 %v768, %v764
    %v1001 = vpack.c.b16 %v769, %v765
    %v1002 = vpack.c.b16 %v770, %v766
    %v1003 = vpack.c.b16 %v771, %v767
    %v1004 = vpack.c.b16 %v776, %v772
    %v1005 = vpack.c.b16 %v777, %v773
    %v1006 = vpack.c.b16 %v778, %v774
    %v1007 = vpack.c.b16 %v779, %v775
    %v1008 = vpack.c.b16 %v784, %v780
    %v1009 = vpack.c.b16 %v785, %v781
    %v1010 = vpack.c.b16 %v786, %v782
    %v1011 = vpack.c.b16 %v787, %v783
    %v1012 = vpack.c.b16 %v792, %v788
    %v1013 = vpack.c.b16 %v793, %v789
    %v1014 = vpack.c.b16 %v794, %v790
    %v1015 = vpack.c.b16 %v795, %v791
    %v1016 = vpack.c.b16 %v800, %v796
    %v1017 = vpack.c.b16 %v801, %v797
    %v1018 = vpack.c.b16 %v802, %v798
    %v1019 = vpack.c.b16 %v803, %v799
    %v1020 = vpack.c.b16 %v808, %v804
    %v1021 = vpack.c.b16 %v809, %v805
    %v1022 = vpack.c.b16 %v810, %v806
    %v1023 = vpack.c.b16 %v811, %v807
    %v1024 = vpack.c.b16 %v816, %v812
    %v1025 = vpack.c.b16 %v817, %v813
    %v1026 = vpack.c.b16 %v818, %v814
    %v1027 = vpack.c.b16 %v819, %v815
    %v1028 = vpack.c.b16 %v824, %v820
    %v1029 = vpack.c.b16 %v825, %v821
    %v1030 = vpack.c.b16 %v826, %v822
    %v1031 = vpack.c.b16 %v827, %v823
    %v1032 = vpack.c.b16 %v832, %v828
    %v1033 = vpack.c.b16 %v833, %v829
    %v1034 = vpack.c.b16 %v834, %v830
    %v1035 = vpack.c.b16 %v835, %v831
    %v1036 = vpack.c.b16 %v840, %v836
    %v1037 = vpack.c.b16 %v841, %v837
    %v1038 = vpack.c.b16 %v842, %v838
    %v1039 = vpack.c.b16 %v843, %v839
    %vm1236 = vcmask 130048
    %v1238 = vsel %vm1236, %v249, 0
    %1240 = vmatpush.bf16.msra.mxu0 %v872
    %1241 = vmatpush.bf16.msra.mxu0 %v868
    %1242 = vmatpush.bf16.msra.mxu0 %v864
    %1243 = vmatpush.bf16.msra.mxu0 %v860
    %1244 = vmatpush.bf16.msra.mxu0 %v856
    %1245 = vmatpush.bf16.msra.mxu0 %v852
    %1246 = vmatpush.bf16.msra.mxu0 %v848
    %1247 = vmatpush.bf16.msra.mxu0 %v844
    %1248 = vmatmul.bf16.gmra.mxu0 %v243
    %v1249 = vpop.f32.mrf.mxu0
    %v1250 = vadd.f32 %v224, %v1249
    %v1251 = vpop.f32.mrf.mxu0
    %1252 = vdwg.mxu0
    %1253 = vmatpush.bf16.msra.mxu0 %v904
    %1254 = vmatpush.bf16.msra.mxu0 %v900
    %1255 = vmatpush.bf16.msra.mxu0 %v896
    %1256 = vmatpush.bf16.msra.mxu0 %v892
    %1257 = vmatpush.bf16.msra.mxu0 %v888
    %1258 = vmatpush.bf16.msra.mxu0 %v884
    %1259 = vmatpush.bf16.msra.mxu0 %v880
    %1260 = vmatpush.bf16.msra.mxu0 %v876
    %1261 = vmatmul.bf16.gmra.mxu0 %v244
    %v1262 = vpop.f32.mrf.mxu0
    %v1263 = vadd.f32 %v1250, %v1262
    %v1264 = vpop.f32.mrf.mxu0
    %1265 = vdwg.mxu0
    %1266 = vmatpush.bf16.msra.mxu0 %v936
    %1267 = vmatpush.bf16.msra.mxu0 %v932
    %1268 = vmatpush.bf16.msra.mxu0 %v928
    %1269 = vmatpush.bf16.msra.mxu0 %v924
    %1270 = vmatpush.bf16.msra.mxu0 %v920
    %1271 = vmatpush.bf16.msra.mxu0 %v916
    %1272 = vmatpush.bf16.msra.mxu0 %v912
    %1273 = vmatpush.bf16.msra.mxu0 %v908
    %1274 = vmatmul.bf16.gmra.mxu0 %v245
    %v1275 = vpop.f32.mrf.mxu0
    %v1276 = vadd.f32 %v1263, %v1275
    %v1277 = vpop.f32.mrf.mxu0
    %1278 = vdwg.mxu0
    %1279 = vmatpush.bf16.msra.mxu0 %v968
    %1280 = vmatpush.bf16.msra.mxu0 %v964
    %1281 = vmatpush.bf16.msra.mxu0 %v960
    %1282 = vmatpush.bf16.msra.mxu0 %v956
    %1283 = vmatpush.bf16.msra.mxu0 %v952
    %1284 = vmatpush.bf16.msra.mxu0 %v948
    %1285 = vmatpush.bf16.msra.mxu0 %v944
    %1286 = vmatpush.bf16.msra.mxu0 %v940
    %1287 = vmatmul.bf16.gmra.mxu0 %v246
    %v1288 = vpop.f32.mrf.mxu0
    %v1289 = vadd.f32 %v1276, %v1288
    %v1290 = vpop.f32.mrf.mxu0
    %1291 = vdwg.mxu0
    %1292 = vmatpush.bf16.msra.mxu0 %v1000
    %1293 = vmatpush.bf16.msra.mxu0 %v996
    %1294 = vmatpush.bf16.msra.mxu0 %v992
    %1295 = vmatpush.bf16.msra.mxu0 %v988
    %1296 = vmatpush.bf16.msra.mxu0 %v984
    %1297 = vmatpush.bf16.msra.mxu0 %v980
    %1298 = vmatpush.bf16.msra.mxu0 %v976
    %1299 = vmatpush.bf16.msra.mxu0 %v972
    %1300 = vmatmul.bf16.gmra.mxu0 %v247
    %v1301 = vpop.f32.mrf.mxu0
    %v1302 = vadd.f32 %v1289, %v1301
    %v1303 = vpop.f32.mrf.mxu0
    %1304 = vdwg.mxu0
    %1305 = vmatpush.bf16.msra.mxu0 %v1032
    %1306 = vmatpush.bf16.msra.mxu0 %v1028
    %1307 = vmatpush.bf16.msra.mxu0 %v1024
    %1308 = vmatpush.bf16.msra.mxu0 %v1020
    %1309 = vmatpush.bf16.msra.mxu0 %v1016
    %1310 = vmatpush.bf16.msra.mxu0 %v1012
    %1311 = vmatpush.bf16.msra.mxu0 %v1008
    %1312 = vmatpush.bf16.msra.mxu0 %v1004
    %1313 = vmatmul.bf16.gmra.mxu0 %v248
    %v1314 = vpop.f32.mrf.mxu0
    %v1315 = vadd.f32 %v1302, %v1314
    %v1316 = vpop.f32.mrf.mxu0
    %1317 = vdwg.mxu0
    %1318 = vmatpush.bf16.msra.mxu0 0
    %1319 = vmatpush.bf16.msra.mxu0 0
    %1320 = vmatpush.bf16.msra.mxu0 0
    %1321 = vmatpush.bf16.msra.mxu0 0
    %1322 = vmatpush.bf16.msra.mxu0 0
    %1323 = vmatpush.bf16.msra.mxu0 0
    %1324 = vmatpush.bf16.msra.mxu0 0
    %1325 = vmatpush.bf16.msra.mxu0 %v1036
    %1326 = vmatmul.bf16.gmra.mxu0 %v1238
    %v1327 = vpop.f32.mrf.mxu0
    %v1328 = vadd.f32 %v1315, %v1327
    %v1329 = vpop.f32.mrf.mxu0
    %1330 = vdwg.mxu0
    %1331 = vmatpush.bf16.msra.mxu0 %v873
    %1332 = vmatpush.bf16.msra.mxu0 %v869
    %1333 = vmatpush.bf16.msra.mxu0 %v865
    %1334 = vmatpush.bf16.msra.mxu0 %v861
    %1335 = vmatpush.bf16.msra.mxu0 %v857
    %1336 = vmatpush.bf16.msra.mxu0 %v853
    %1337 = vmatpush.bf16.msra.mxu0 %v849
    %1338 = vmatpush.bf16.msra.mxu0 %v845
    %1339 = vmatmul.bf16.gmra.mxu0 %v243
    %v1340 = vpop.f32.mrf.mxu0
    %v1341 = vadd.f32 %v225, %v1340
    %v1342 = vpop.f32.mrf.mxu0
    %1343 = vdwg.mxu0
    %1344 = vmatpush.bf16.msra.mxu0 %v905
    %1345 = vmatpush.bf16.msra.mxu0 %v901
    %1346 = vmatpush.bf16.msra.mxu0 %v897
    %1347 = vmatpush.bf16.msra.mxu0 %v893
    %1348 = vmatpush.bf16.msra.mxu0 %v889
    %1349 = vmatpush.bf16.msra.mxu0 %v885
    %1350 = vmatpush.bf16.msra.mxu0 %v881
    %1351 = vmatpush.bf16.msra.mxu0 %v877
    %1352 = vmatmul.bf16.gmra.mxu0 %v244
    %v1353 = vpop.f32.mrf.mxu0
    %v1354 = vadd.f32 %v1341, %v1353
    %v1355 = vpop.f32.mrf.mxu0
    %1356 = vdwg.mxu0
    %1357 = vmatpush.bf16.msra.mxu0 %v937
    %1358 = vmatpush.bf16.msra.mxu0 %v933
    %1359 = vmatpush.bf16.msra.mxu0 %v929
    %1360 = vmatpush.bf16.msra.mxu0 %v925
    %1361 = vmatpush.bf16.msra.mxu0 %v921
    %1362 = vmatpush.bf16.msra.mxu0 %v917
    %1363 = vmatpush.bf16.msra.mxu0 %v913
    %1364 = vmatpush.bf16.msra.mxu0 %v909
    %1365 = vmatmul.bf16.gmra.mxu0 %v245
    %v1366 = vpop.f32.mrf.mxu0
    %v1367 = vadd.f32 %v1354, %v1366
    %v1368 = vpop.f32.mrf.mxu0
    %1369 = vdwg.mxu0
    %1370 = vmatpush.bf16.msra.mxu0 %v969
    %1371 = vmatpush.bf16.msra.mxu0 %v965
    %1372 = vmatpush.bf16.msra.mxu0 %v961
    %1373 = vmatpush.bf16.msra.mxu0 %v957
    %1374 = vmatpush.bf16.msra.mxu0 %v953
    %1375 = vmatpush.bf16.msra.mxu0 %v949
    %1376 = vmatpush.bf16.msra.mxu0 %v945
    %1377 = vmatpush.bf16.msra.mxu0 %v941
    %1378 = vmatmul.bf16.gmra.mxu0 %v246
    %v1379 = vpop.f32.mrf.mxu0
    %v1380 = vadd.f32 %v1367, %v1379
    %v1381 = vpop.f32.mrf.mxu0
    %1382 = vdwg.mxu0
    %1383 = vmatpush.bf16.msra.mxu0 %v1001
    %1384 = vmatpush.bf16.msra.mxu0 %v997
    %1385 = vmatpush.bf16.msra.mxu0 %v993
    %1386 = vmatpush.bf16.msra.mxu0 %v989
    %1387 = vmatpush.bf16.msra.mxu0 %v985
    %1388 = vmatpush.bf16.msra.mxu0 %v981
    %1389 = vmatpush.bf16.msra.mxu0 %v977
    %1390 = vmatpush.bf16.msra.mxu0 %v973
    %1391 = vmatmul.bf16.gmra.mxu0 %v247
    %v1392 = vpop.f32.mrf.mxu0
    %v1393 = vadd.f32 %v1380, %v1392
    %v1394 = vpop.f32.mrf.mxu0
    %1395 = vdwg.mxu0
    %1396 = vmatpush.bf16.msra.mxu0 %v1033
    %1397 = vmatpush.bf16.msra.mxu0 %v1029
    %1398 = vmatpush.bf16.msra.mxu0 %v1025
    %1399 = vmatpush.bf16.msra.mxu0 %v1021
    %1400 = vmatpush.bf16.msra.mxu0 %v1017
    %1401 = vmatpush.bf16.msra.mxu0 %v1013
    %1402 = vmatpush.bf16.msra.mxu0 %v1009
    %1403 = vmatpush.bf16.msra.mxu0 %v1005
    %1404 = vmatmul.bf16.gmra.mxu0 %v248
    %v1405 = vpop.f32.mrf.mxu0
    %v1406 = vadd.f32 %v1393, %v1405
    %v1407 = vpop.f32.mrf.mxu0
    %1408 = vdwg.mxu0
    %1409 = vmatpush.bf16.msra.mxu0 0
    %1410 = vmatpush.bf16.msra.mxu0 0
    %1411 = vmatpush.bf16.msra.mxu0 0
    %1412 = vmatpush.bf16.msra.mxu0 0
    %1413 = vmatpush.bf16.msra.mxu0 0
    %1414 = vmatpush.bf16.msra.mxu0 0
    %1415 = vmatpush.bf16.msra.mxu0 0
    %1416 = vmatpush.bf16.msra.mxu0 %v1037
    %1417 = vmatmul.bf16.gmra.mxu0 %v1238
    %v1418 = vpop.f32.mrf.mxu0
    %v1419 = vadd.f32 %v1406, %v1418
    %v1420 = vpop.f32.mrf.mxu0
    %1421 = vdwg.mxu0
    %1422 = vmatpush.bf16.msra.mxu0 %v874
    %1423 = vmatpush.bf16.msra.mxu0 %v870
    %1424 = vmatpush.bf16.msra.mxu0 %v866
    %1425 = vmatpush.bf16.msra.mxu0 %v862
    %1426 = vmatpush.bf16.msra.mxu0 %v858
    %1427 = vmatpush.bf16.msra.mxu0 %v854
    %1428 = vmatpush.bf16.msra.mxu0 %v850
    %1429 = vmatpush.bf16.msra.mxu0 %v846
    %1430 = vmatmul.bf16.gmra.mxu0 %v243
    %v1431 = vpop.f32.mrf.mxu0
    %v1432 = vadd.f32 %v226, %v1431
    %v1433 = vpop.f32.mrf.mxu0
    %1434 = vdwg.mxu0
    %1435 = vmatpush.bf16.msra.mxu0 %v906
    %1436 = vmatpush.bf16.msra.mxu0 %v902
    %1437 = vmatpush.bf16.msra.mxu0 %v898
    %1438 = vmatpush.bf16.msra.mxu0 %v894
    %1439 = vmatpush.bf16.msra.mxu0 %v890
    %1440 = vmatpush.bf16.msra.mxu0 %v886
    %1441 = vmatpush.bf16.msra.mxu0 %v882
    %1442 = vmatpush.bf16.msra.mxu0 %v878
    %1443 = vmatmul.bf16.gmra.mxu0 %v244
    %v1444 = vpop.f32.mrf.mxu0
    %v1445 = vadd.f32 %v1432, %v1444
    %v1446 = vpop.f32.mrf.mxu0
    %1447 = vdwg.mxu0
    %1448 = vmatpush.bf16.msra.mxu0 %v938
    %1449 = vmatpush.bf16.msra.mxu0 %v934
    %1450 = vmatpush.bf16.msra.mxu0 %v930
    %1451 = vmatpush.bf16.msra.mxu0 %v926
    %1452 = vmatpush.bf16.msra.mxu0 %v922
    %1453 = vmatpush.bf16.msra.mxu0 %v918
    %1454 = vmatpush.bf16.msra.mxu0 %v914
    %1455 = vmatpush.bf16.msra.mxu0 %v910
    %1456 = vmatmul.bf16.gmra.mxu0 %v245
    %v1457 = vpop.f32.mrf.mxu0
    %v1458 = vadd.f32 %v1445, %v1457
    %v1459 = vpop.f32.mrf.mxu0
    %1460 = vdwg.mxu0
    %1461 = vmatpush.bf16.msra.mxu0 %v970
    %1462 = vmatpush.bf16.msra.mxu0 %v966
    %1463 = vmatpush.bf16.msra.mxu0 %v962
    %1464 = vmatpush.bf16.msra.mxu0 %v958
    %1465 = vmatpush.bf16.msra.mxu0 %v954
    %1466 = vmatpush.bf16.msra.mxu0 %v950
    %1467 = vmatpush.bf16.msra.mxu0 %v946
    %1468 = vmatpush.bf16.msra.mxu0 %v942
    %1469 = vmatmul.bf16.gmra.mxu0 %v246
    %v1470 = vpop.f32.mrf.mxu0
    %v1471 = vadd.f32 %v1458, %v1470
    %v1472 = vpop.f32.mrf.mxu0
    %1473 = vdwg.mxu0
    %1474 = vmatpush.bf16.msra.mxu0 %v1002
    %1475 = vmatpush.bf16.msra.mxu0 %v998
    %1476 = vmatpush.bf16.msra.mxu0 %v994
    %1477 = vmatpush.bf16.msra.mxu0 %v990
    %1478 = vmatpush.bf16.msra.mxu0 %v986
    %1479 = vmatpush.bf16.msra.mxu0 %v982
    %1480 = vmatpush.bf16.msra.mxu0 %v978
    %1481 = vmatpush.bf16.msra.mxu0 %v974
    %1482 = vmatmul.bf16.gmra.mxu0 %v247
    %v1483 = vpop.f32.mrf.mxu0
    %v1484 = vadd.f32 %v1471, %v1483
    %v1485 = vpop.f32.mrf.mxu0
    %1486 = vdwg.mxu0
    %1487 = vmatpush.bf16.msra.mxu0 %v1034
    %1488 = vmatpush.bf16.msra.mxu0 %v1030
    %1489 = vmatpush.bf16.msra.mxu0 %v1026
    %1490 = vmatpush.bf16.msra.mxu0 %v1022
    %1491 = vmatpush.bf16.msra.mxu0 %v1018
    %1492 = vmatpush.bf16.msra.mxu0 %v1014
    %1493 = vmatpush.bf16.msra.mxu0 %v1010
    %1494 = vmatpush.bf16.msra.mxu0 %v1006
    %1495 = vmatmul.bf16.gmra.mxu0 %v248
    %v1496 = vpop.f32.mrf.mxu0
    %v1497 = vadd.f32 %v1484, %v1496
    %v1498 = vpop.f32.mrf.mxu0
    %1499 = vdwg.mxu0
    %1500 = vmatpush.bf16.msra.mxu0 0
    %1501 = vmatpush.bf16.msra.mxu0 0
    %1502 = vmatpush.bf16.msra.mxu0 0
    %1503 = vmatpush.bf16.msra.mxu0 0
    %1504 = vmatpush.bf16.msra.mxu0 0
    %1505 = vmatpush.bf16.msra.mxu0 0
    %1506 = vmatpush.bf16.msra.mxu0 0
    %1507 = vmatpush.bf16.msra.mxu0 %v1038
    %1508 = vmatmul.bf16.gmra.mxu0 %v1238
    %v1509 = vpop.f32.mrf.mxu0
    %v1510 = vadd.f32 %v1497, %v1509
    %v1511 = vpop.f32.mrf.mxu0
    %1512 = vdwg.mxu0
    %1513 = vmatpush.bf16.msra.mxu0 %v875
    %1514 = vmatpush.bf16.msra.mxu0 %v871
    %1515 = vmatpush.bf16.msra.mxu0 %v867
    %1516 = vmatpush.bf16.msra.mxu0 %v863
    %1517 = vmatpush.bf16.msra.mxu0 %v859
    %1518 = vmatpush.bf16.msra.mxu0 %v855
    %1519 = vmatpush.bf16.msra.mxu0 %v851
    %1520 = vmatpush.bf16.msra.mxu0 %v847
    %1521 = vmatmul.bf16.gmra.mxu0 %v243
    %v1522 = vpop.f32.mrf.mxu0
    %v1523 = vadd.f32 %v227, %v1522
    %v1524 = vpop.f32.mrf.mxu0
    %1525 = vdwg.mxu0
    %1526 = vmatpush.bf16.msra.mxu0 %v907
    %1527 = vmatpush.bf16.msra.mxu0 %v903
    %1528 = vmatpush.bf16.msra.mxu0 %v899
    %1529 = vmatpush.bf16.msra.mxu0 %v895
    %1530 = vmatpush.bf16.msra.mxu0 %v891
    %1531 = vmatpush.bf16.msra.mxu0 %v887
    %1532 = vmatpush.bf16.msra.mxu0 %v883
    %1533 = vmatpush.bf16.msra.mxu0 %v879
    %1534 = vmatmul.bf16.gmra.mxu0 %v244
    %v1535 = vpop.f32.mrf.mxu0
    %v1536 = vadd.f32 %v1523, %v1535
    %v1537 = vpop.f32.mrf.mxu0
    %1538 = vdwg.mxu0
    %1539 = vmatpush.bf16.msra.mxu0 %v939
    %1540 = vmatpush.bf16.msra.mxu0 %v935
    %1541 = vmatpush.bf16.msra.mxu0 %v931
    %1542 = vmatpush.bf16.msra.mxu0 %v927
    %1543 = vmatpush.bf16.msra.mxu0 %v923
    %1544 = vmatpush.bf16.msra.mxu0 %v919
    %1545 = vmatpush.bf16.msra.mxu0 %v915
    %1546 = vmatpush.bf16.msra.mxu0 %v911
    %1547 = vmatmul.bf16.gmra.mxu0 %v245
    %v1548 = vpop.f32.mrf.mxu0
    %v1549 = vadd.f32 %v1536, %v1548
    %v1550 = vpop.f32.mrf.mxu0
    %1551 = vdwg.mxu0
    %1552 = vmatpush.bf16.msra.mxu0 %v971
    %1553 = vmatpush.bf16.msra.mxu0 %v967
    %1554 = vmatpush.bf16.msra.mxu0 %v963
    %1555 = vmatpush.bf16.msra.mxu0 %v959
    %1556 = vmatpush.bf16.msra.mxu0 %v955
    %1557 = vmatpush.bf16.msra.mxu0 %v951
    %1558 = vmatpush.bf16.msra.mxu0 %v947
    %1559 = vmatpush.bf16.msra.mxu0 %v943
    %1560 = vmatmul.bf16.gmra.mxu0 %v246
    %v1561 = vpop.f32.mrf.mxu0
    %v1562 = vadd.f32 %v1549, %v1561
    %v1563 = vpop.f32.mrf.mxu0
    %1564 = vdwg.mxu0
    %1565 = vmatpush.bf16.msra.mxu0 %v1003
    %1566 = vmatpush.bf16.msra.mxu0 %v999
    %1567 = vmatpush.bf16.msra.mxu0 %v995
    %1568 = vmatpush.bf16.msra.mxu0 %v991
    %1569 = vmatpush.bf16.msra.mxu0 %v987
    %1570 = vmatpush.bf16.msra.mxu0 %v983
    %1571 = vmatpush.bf16.msra.mxu0 %v979
    %1572 = vmatpush.bf16.msra.mxu0 %v975
    %1573 = vmatmul.bf16.gmra.mxu0 %v247
    %v1574 = vpop.f32.mrf.mxu0
    %v1575 = vadd.f32 %v1562, %v1574
    %v1576 = vpop.f32.mrf.mxu0
    %1577 = vdwg.mxu0
    %1578 = vmatpush.bf16.msra.mxu0 %v1035
    %1579 = vmatpush.bf16.msra.mxu0 %v1031
    %1580 = vmatpush.bf16.msra.mxu0 %v1027
    %1581 = vmatpush.bf16.msra.mxu0 %v1023
    %1582 = vmatpush.bf16.msra.mxu0 %v1019
    %1583 = vmatpush.bf16.msra.mxu0 %v1015
    %1584 = vmatpush.bf16.msra.mxu0 %v1011
    %1585 = vmatpush.bf16.msra.mxu0 %v1007
    %1586 = vmatmul.bf16.gmra.mxu0 %v248
    %v1587 = vpop.f32.mrf.mxu0
    %v1588 = vadd.f32 %v1575, %v1587
    %v1589 = vpop.f32.mrf.mxu0
    %1590 = vdwg.mxu0
    %1591 = vmatpush.bf16.msra.mxu0 0
    %1592 = vmatpush.bf16.msra.mxu0 0
    %1593 = vmatpush.bf16.msra.mxu0 0
    %1594 = vmatpush.bf16.msra.mxu0 0
    %1595 = vmatpush.bf16.msra.mxu0 0
    %1596 = vmatpush.bf16.msra.mxu0 0
    %1597 = vmatpush.bf16.msra.mxu0 0
    %1598 = vmatpush.bf16.msra.mxu0 %v1039
    %1599 = vmatmul.bf16.gmra.mxu0 %v1238
    %v1600 = vpop.f32.mrf.mxu0
    %v1601 = vadd.f32 %v1588, %v1600
    %v1602 = vpop.f32.mrf.mxu0
    %1603 = vdwg.mxu0
    %v1604 = vmax.f32 %v1328, 0.0
    %v1605 = vmax.f32 %v1419, 0.0
    %v1606 = vmax.f32 %v1510, 0.0
    %v1607 = vmax.f32 %v1601, 0.0
    %v1608 = vpack.c.bf16 %v1604, %v1604
    %v1609 = vpack.c.bf16 %v1605, %v1605
    %v1610 = vpack.c.bf16 %v1606, %v1606
    %v1611 = vpack.c.bf16 %v1607, %v1607
    %v1612 = vld [vmem:[%s3] sm:$0xf]
    %v1613 = vld [vmem:[%s3 + $0x4] sm:$0xf]
    %v1614 = vld [vmem:[%s3 + $0x8] sm:$0xf]
    %v1615 = vld [vmem:[%s3 + $0xc] sm:$0xf]
    %v1616 = vld [vmem:[%s3 + $0x10] sm:$0xf]
    %v1617 = vld [vmem:[%s3 + $0x14] sm:$0xf]
    %v1618 = vld [vmem:[%s3 + $0x18] sm:$0xf]
    %v1619 = vld [vmem:[%s3 + $0x1c] sm:$0xf]
    %v1620 = vld [vmem:[%s3 + $0x20] sm:$0xf]
    %v1621 = vld [vmem:[%s3 + $0x24] sm:$0xf]
    %v1622 = vld [vmem:[%s3 + $0x28] sm:$0xf]
    %v1623 = vld [vmem:[%s3 + $0x2c] sm:$0xf]
    %v1624 = vld [vmem:[%s3 + $0x30] sm:$0xf]
    %v1625 = vld [vmem:[%s3 + $0x34] sm:$0xf]
    %v1626 = vld [vmem:[%s3 + $0x38] sm:$0xf]
    %v1627 = vld [vmem:[%s3 + $0x3c] sm:$0xf]
    %v1628 = vld [vmem:[%s3 + $0x40] sm:$0xf]
    %v1629 = vld [vmem:[%s3 + $0x44] sm:$0xf]
    %v1630 = vld [vmem:[%s3 + $0x48] sm:$0xf]
    %v1631 = vld [vmem:[%s3 + $0x4c] sm:$0xf]
    %v1632 = vld [vmem:[%s3 + $0x50] sm:$0xf]
    %v1633 = vld [vmem:[%s3 + $0x54] sm:$0xf]
    %v1634 = vld [vmem:[%s3 + $0x58] sm:$0xf]
    %v1635 = vld [vmem:[%s3 + $0x5c] sm:$0xf]
    %v1636 = vld [vmem:[%s3 + $0x60] sm:$0xf]
    %v1637 = vld [vmem:[%s3 + $0x64] sm:$0xf]
    %v1638 = vld [vmem:[%s3 + $0x68] sm:$0xf]
    %v1639 = vld [vmem:[%s3 + $0x6c] sm:$0xf]
    %v1640 = vld [vmem:[%s3 + $0x70] sm:$0xf]
    %v1641 = vld [vmem:[%s3 + $0x74] sm:$0xf]
    %v1642 = vld [vmem:[%s3 + $0x78] sm:$0xf]
    %v1643 = vld [vmem:[%s3 + $0x7c] sm:$0xf]
    %v1644 = vld [vmem:[%s3 + $0x80] sm:$0xf]
    %v1645 = vld [vmem:[%s3 + $0x84] sm:$0xf]
    %v1646 = vld [vmem:[%s3 + $0x88] sm:$0xf]
    %v1647 = vld [vmem:[%s3 + $0x8c] sm:$0xf]
    %v1648 = vld [vmem:[%s3 + $0x90] sm:$0xf]
    %v1649 = vld [vmem:[%s3 + $0x94] sm:$0xf]
    %v1650 = vld [vmem:[%s3 + $0x98] sm:$0xf]
    %v1651 = vld [vmem:[%s3 + $0x9c] sm:$0xf]
    %v1652 = vld [vmem:[%s3 + $0xa0] sm:$0xf]
    %v1653 = vld [vmem:[%s3 + $0xa4] sm:$0xf]
    %v1654 = vld [vmem:[%s3 + $0xa8] sm:$0xf]
    %v1655 = vld [vmem:[%s3 + $0xac] sm:$0xf]
    %v1656 = vld [vmem:[%s3 + $0xb0] sm:$0xf]
    %v1657 = vld [vmem:[%s3 + $0xb4] sm:$0xf]
    %v1658 = vld [vmem:[%s3 + $0xb8] sm:$0xf]
    %v1659 = vld [vmem:[%s3 + $0xbc] sm:$0xf]
    %v1660 = vld [vmem:[%s3 + $0xc0] sm:$0xf]
    %v1661 = vld [vmem:[%s3 + $0xc4] sm:$0xf]
    %v1662 = vld [vmem:[%s4] sm:$0x1]
    %v1664 = vperm.slane %v1662, 0
    %v1716 = vunpack.c.l.b16 %v1612
    %v1717 = vunpack.c.l.b16 %v1613
    %v1718 = vunpack.c.l.b16 %v1614
    %v1719 = vunpack.c.l.b16 %v1615
    %v1720 = vunpack.c.l.b16 %v1616
    %v1721 = vunpack.c.l.b16 %v1617
    %v1722 = vunpack.c.l.b16 %v1618
    %v1723 = vunpack.c.l.b16 %v1619
    %v1724 = vunpack.c.l.b16 %v1620
    %v1725 = vunpack.c.l.b16 %v1621
    %v1726 = vunpack.c.l.b16 %v1622
    %v1727 = vunpack.c.l.b16 %v1623
    %v1728 = vunpack.c.l.b16 %v1624
    %v1729 = vunpack.c.l.b16 %v1625
    %v1730 = vunpack.c.l.b16 %v1626
    %v1731 = vunpack.c.l.b16 %v1627
    %v1732 = vunpack.c.l.b16 %v1628
    %v1733 = vunpack.c.l.b16 %v1629
    %v1734 = vunpack.c.l.b16 %v1630
    %v1735 = vunpack.c.l.b16 %v1631
    %v1736 = vunpack.c.l.b16 %v1632
    %v1737 = vunpack.c.l.b16 %v1633
    %v1738 = vunpack.c.l.b16 %v1634
    %v1739 = vunpack.c.l.b16 %v1635
    %v1740 = vunpack.c.l.b16 %v1636
    %v1741 = vunpack.c.l.b16 %v1637
    %v1742 = vunpack.c.l.b16 %v1638
    %v1743 = vunpack.c.l.b16 %v1639
    %v1744 = vunpack.c.l.b16 %v1640
    %v1745 = vunpack.c.l.b16 %v1641
    %v1746 = vunpack.c.l.b16 %v1642
    %v1747 = vunpack.c.l.b16 %v1643
    %v1748 = vunpack.c.l.b16 %v1644
    %v1749 = vunpack.c.l.b16 %v1645
    %v1750 = vunpack.c.l.b16 %v1646
    %v1751 = vunpack.c.l.b16 %v1647
    %v1752 = vunpack.c.l.b16 %v1648
    %v1753 = vunpack.c.l.b16 %v1649
    %v1754 = vunpack.c.l.b16 %v1650
    %v1755 = vunpack.c.l.b16 %v1651
    %v1756 = vunpack.c.l.b16 %v1652
    %v1757 = vunpack.c.l.b16 %v1653
    %v1758 = vunpack.c.l.b16 %v1654
    %v1759 = vunpack.c.l.b16 %v1655
    %v1760 = vunpack.c.l.b16 %v1656
    %v1761 = vunpack.c.l.b16 %v1657
    %v1762 = vunpack.c.l.b16 %v1658
    %v1763 = vunpack.c.l.b16 %v1659
    %v1764 = vunpack.c.l.b16 %v1660
    %v1765 = vunpack.c.l.b16 %v1661
    %v1766 = vpack.c.b16 %v1717, %v1716
    %v1767 = vpack.c.b16 %v1719, %v1718
    %v1768 = vpack.c.b16 %v1721, %v1720
    %v1769 = vpack.c.b16 %v1723, %v1722
    %v1770 = vpack.c.b16 %v1725, %v1724
    %v1771 = vpack.c.b16 %v1727, %v1726
    %v1772 = vpack.c.b16 %v1729, %v1728
    %v1773 = vpack.c.b16 %v1731, %v1730
    %v1774 = vpack.c.b16 %v1733, %v1732
    %v1775 = vpack.c.b16 %v1735, %v1734
    %v1776 = vpack.c.b16 %v1737, %v1736
    %v1777 = vpack.c.b16 %v1739, %v1738
    %v1778 = vpack.c.b16 %v1741, %v1740
    %v1779 = vpack.c.b16 %v1743, %v1742
    %v1780 = vpack.c.b16 %v1745, %v1744
    %v1781 = vpack.c.b16 %v1747, %v1746
    %v1782 = vpack.c.b16 %v1749, %v1748
    %v1783 = vpack.c.b16 %v1751, %v1750
    %v1784 = vpack.c.b16 %v1753, %v1752
    %v1785 = vpack.c.b16 %v1755, %v1754
    %v1786 = vpack.c.b16 %v1757, %v1756
    %v1787 = vpack.c.b16 %v1759, %v1758
    %v1788 = vpack.c.b16 %v1761, %v1760
    %v1789 = vpack.c.b16 %v1763, %v1762
    %v1790 = vpack.c.b16 %v1765, %v1764
    %v1817 = vsel %vm1236, %v1611, 0
    %1819 = vmatpush.bf16.msra.mxu0 %v1773
    %1820 = vmatpush.bf16.msra.mxu0 %v1772
    %1821 = vmatpush.bf16.msra.mxu0 %v1771
    %1822 = vmatpush.bf16.msra.mxu0 %v1770
    %1823 = vmatpush.bf16.msra.mxu0 %v1769
    %1824 = vmatpush.bf16.msra.mxu0 %v1768
    %1825 = vmatpush.bf16.msra.mxu0 %v1767
    %1826 = vmatpush.bf16.msra.mxu0 %v1766
    %1827 = vmatmul.bf16.gmra.mxu0 %v1608
    %v1828 = vpop.f32.mrf.mxu0
    %v1829 = vadd.f32 %v1664, %v1828
    %v1830 = vpop.f32.mrf.mxu0
    %1831 = vdwg.mxu0
    %1832 = vmatpush.bf16.msra.mxu0 %v1781
    %1833 = vmatpush.bf16.msra.mxu0 %v1780
    %1834 = vmatpush.bf16.msra.mxu0 %v1779
    %1835 = vmatpush.bf16.msra.mxu0 %v1778
    %1836 = vmatpush.bf16.msra.mxu0 %v1777
    %1837 = vmatpush.bf16.msra.mxu0 %v1776
    %1838 = vmatpush.bf16.msra.mxu0 %v1775
    %1839 = vmatpush.bf16.msra.mxu0 %v1774
    %1840 = vmatmul.bf16.gmra.mxu0 %v1609
    %v1841 = vpop.f32.mrf.mxu0
    %v1842 = vadd.f32 %v1829, %v1841
    %v1843 = vpop.f32.mrf.mxu0
    %1844 = vdwg.mxu0
    %1845 = vmatpush.bf16.msra.mxu0 %v1789
    %1846 = vmatpush.bf16.msra.mxu0 %v1788
    %1847 = vmatpush.bf16.msra.mxu0 %v1787
    %1848 = vmatpush.bf16.msra.mxu0 %v1786
    %1849 = vmatpush.bf16.msra.mxu0 %v1785
    %1850 = vmatpush.bf16.msra.mxu0 %v1784
    %1851 = vmatpush.bf16.msra.mxu0 %v1783
    %1852 = vmatpush.bf16.msra.mxu0 %v1782
    %1853 = vmatmul.bf16.gmra.mxu0 %v1610
    %v1854 = vpop.f32.mrf.mxu0
    %v1855 = vadd.f32 %v1842, %v1854
    %v1856 = vpop.f32.mrf.mxu0
    %1857 = vdwg.mxu0
    %1858 = vmatpush.bf16.msra.mxu0 0
    %1859 = vmatpush.bf16.msra.mxu0 0
    %1860 = vmatpush.bf16.msra.mxu0 0
    %1861 = vmatpush.bf16.msra.mxu0 0
    %1862 = vmatpush.bf16.msra.mxu0 0
    %1863 = vmatpush.bf16.msra.mxu0 0
    %1864 = vmatpush.bf16.msra.mxu0 0
    %1865 = vmatpush.bf16.msra.mxu0 %v1790
    %1866 = vmatmul.bf16.gmra.mxu0 %v1817
    %v1867 = vpop.f32.mrf.mxu0
    %v1868 = vadd.f32 %v1855, %v1867
    %v1869 = vpop.f32.mrf.mxu0
    %1870 = vdwg.mxu0
    %1871 = vst [vmem:[#allocation2] sm:$0xff] %v1868
    // Predicated region
    $region22: #{vae_forward.1} parent=1 // pred_check
      _
    $region23: #{vae_forward.1} parent=1 // pred_check_branch
      %1873 = sbr.rel (0) target = $region25
    $region24: #{vae_forward.1} parent=1 // pred_region
      %1875 = vsyncadd [#allocation3], 0
      %s1877 = sshll.u32 [#allocation2], 4
      %s1878 = int_to_ptr.vmem [resolvable:$true] %s1877
      %s1879 = sshll.u32 %s5, 4
      %s1880 = int_to_ptr.hbm [resolvable:$true] %s1879
      %1882 = dma.vmem_to_hbm [thread:$0]  %s1878, 128, %s1880, [#allocation3]
    $region25: #{vae_forward.1} parent=1 // pred_fallthru
      _
    // Predicated region
    $region26: #{vae_forward.1} parent=1 // pred_check
      _
    $region27: #{vae_forward.1} parent=1 // pred_check_branch
      %1884 = sbr.rel (0) target = $region29
    $region28: #{vae_forward.1} parent=1 // pred_region
      %1886 = dma.done [#allocation3], 128
    $region29: #{vae_forward.1} parent=1 // pred_fallthru
      _
    %1887 = vsyncpa [#allocation3], 1

</llo_original>
